<compile_context>
chip_gen: v6e
topology: v6e:2x2x1
jax: 0.10.0
libtpu: 0.0.40
codegen_flags: <defaults>
</compile_context>

<pallas_src>
import numpy as np
import jax
import jax.numpy as jnp
from jax.experimental import pallas as pl
from jax.experimental.pallas import tpu as pltpu

FLOW_LAYERS = 10
PATCH_SIZE = 1
D = 3 * PATCH_SIZE * PATCH_SIZE          # features per sample (3 for patch_size=1)
AFFINE_EPS = 1e-4
LOG2PI = float(np.log(2.0 * np.pi))


def flow_kernel(w_ref, b_ref, ld_ref, x_ref, aff_ref, z_ref, logdet_ref):
    """Whole flow forward for one batch tile (batch on the lane axis).

    w_ref  : SMEM ((L+1)*D*D,)  flattened weights, row-major [layer, out_feat, in_feat]
    b_ref  : SMEM ((L+1)*D,)    flattened biases
    ld_ref : SMEM (1,)          sum over layers of slogdet(W_i) (batch-independent)
    x_ref  : VMEM (D, TN)       input tile, batch on lanes
    aff_ref: VMEM (L*2*D, TN)   affine rows: layer i scale_j at i*2D+j, shift_j at i*2D+D+j
    z_ref  : VMEM (D, TN)       output latent
    logdet_ref : VMEM (1, TN)   total log|det J| + Gaussian log-prob term
    """
    # Current features as D lane-dense (1, TN) rows.
    z = [x_ref[k:k + 1, :] for k in range(D)]
    logdet = jnp.zeros_like(z[0])

    for i in range(FLOW_LAYERS):
        wbase = i * D * D
        bbase = i * D
        # NaiveLinear: y_j = sum_k W[j, k] * z_k + b_j  (scalar-broadcast VPU FMAs)
        y = []
        for j in range(D):
            acc = z[0] * w_ref[wbase + j * D] + b_ref[bbase + j]
            for k in range(1, D):
                acc = acc + z[k] * w_ref[wbase + j * D + k]
            y.append(acc)

        # Affine coupling driven by external affine_info (lane-dense rows).
        abase = i * 2 * D
        for j in range(D):
            s = jax.nn.sigmoid(aff_ref[abase + j:abase + j + 1, :] + 2.0) + AFFINE_EPS
            z[j] = y[j] * s + aff_ref[abase + D + j:abase + D + j + 1, :]
            logdet = logdet + jnp.log(s)

    # Last NaiveLinear + standard-normal log-prob term.
    wbase = FLOW_LAYERS * D * D
    bbase = FLOW_LAYERS * D
    for j in range(D):
        acc = z[0] * w_ref[wbase + j * D] + b_ref[bbase + j]
        for k in range(1, D):
            acc = acc + z[k] * w_ref[wbase + j * D + k]
        z_ref[j:j + 1, :] = acc
        logdet = logdet - 0.5 * (acc * acc + LOG2PI)

    # Batch-independent sum of slogdet(W_i) over all (L+1) linear layers.
    logdet_ref[...] = logdet + ld_ref[0]


def flow_forward(x, affine_info, weights, biases, *, tn=2048):
    """Pallas-backed Flow.forward. Returns (z, total_log_det_J).

    Note: as in the PyTorch module, the returned log-det includes the
    -0.5*(z^2 + log(2*pi)) Gaussian log-prob term.
    """
    n = x.shape[0]
    naff = affine_info.shape[1]
    assert naff == 2 * D * FLOW_LAYERS

    # slogdet of tiny DxD weights is batch-independent: once, in plain JAX.
    # TODO(synk): slogdet has no Pallas TPU lowering; passed in as an SMEM scalar.
    sum_logabsdet = jnp.sum(
        jnp.linalg.slogdet(weights.astype(jnp.float32))[1]
    ).reshape(1).astype(jnp.float32)

    # Flattened parameters for SMEM scalar reads.
    w_flat = weights.astype(jnp.float32).reshape(-1)    # ((L+1)*D*D,)
    b_flat = biases.astype(jnp.float32).reshape(-1)     # ((L+1)*D,)

    # Lane-dense, batch-on-lane layout (transposes done here, not in the kernel).
    x_t = jnp.transpose(x.astype(jnp.float32))                 # (D, n)
    aff_t = jnp.transpose(affine_info.astype(jnp.float32))     # (L*2*D, n)

    # Pick a lane-multiple tile (<= tn), pad batch up to a multiple of it.
    tile = max(128, min(int(tn), ((n + 127) // 128) * 128))
    tile = (tile // 128) * 128
    n_pad = ((n + tile - 1) // tile) * tile
    if n_pad != n:
        x_t = jnp.pad(x_t, ((0, 0), (0, n_pad - n)))
        aff_t = jnp.pad(aff_t, ((0, 0), (0, n_pad - n)))

    z_t, logdet_t = pl.pallas_call(
        flow_kernel,
        out_shape=(
            jax.ShapeDtypeStruct((D, n_pad), jnp.float32),
            jax.ShapeDtypeStruct((1, n_pad), jnp.float32),
        ),
        grid_spec=pltpu.PrefetchScalarGridSpec(
            num_scalar_prefetch=0,
            grid=(n_pad // tile,),
            in_specs=[
                pl.BlockSpec(memory_space=pltpu.MemorySpace.SMEM),        # weights (flat)
                pl.BlockSpec(memory_space=pltpu.MemorySpace.SMEM),        # biases  (flat)
                pl.BlockSpec(memory_space=pltpu.MemorySpace.SMEM),        # sum slogdet
                pl.BlockSpec((D, tile), lambda i: (0, i)),                # x tile (D, TN)
                pl.BlockSpec((2 * D * FLOW_LAYERS, tile), lambda i: (0, i)),  # affine tile
            ],
            out_specs=(
                pl.BlockSpec((D, tile), lambda i: (0, i)),                # z (D, TN)
                pl.BlockSpec((1, tile), lambda i: (0, i)),                # logdet (1, TN)
            ),
        ),
        compiler_params=pltpu.CompilerParams(dimension_semantics=("parallel",)),
    )(w_flat, b_flat, sum_logabsdet, x_t, aff_t)

    z = jnp.transpose(z_t)[:n]
    logdet = logdet_t[0, :n]
    return z, logdet


def flow_reference(x, affine_info, weights, biases):
    """Pure-JAX reference matching the PyTorch forward semantics exactly."""
    z = x.astype(jnp.float32)
    logdet = jnp.zeros((x.shape[0],), dtype=jnp.float32)
    for i in range(FLOW_LAYERS):
        z = z @ weights[i].T + biases[i]
        logdet = logdet + jnp.linalg.slogdet(weights[i])[1]
        aff = affine_info[:, i * 2 * D:(i + 1) * 2 * D]
        scale = jax.nn.sigmoid(aff[:, :D] + 2.0) + AFFINE_EPS
        shift = aff[:, D:]
        z = z * scale + shift
        logdet = logdet + jnp.sum(jnp.log(scale), axis=-1)
    z = z @ weights[FLOW_LAYERS].T + biases[FLOW_LAYERS]
    logdet = logdet + jnp.linalg.slogdet(weights[FLOW_LAYERS])[1]
    logdet = logdet + jnp.sum(-0.5 * (z ** 2 + LOG2PI), axis=-1)
    return z, logdet


if __name__ == "__main__":
    key = jax.random.PRNGKey(0)
    kx, ka, kw = jax.random.split(key, 3)

    N = 1024  # small demo batch; tn=512 below -> grid=(2,) so both v7x TCs are exercised
    x = jax.random.normal(kx, (N, D), dtype=jnp.float32)
    affine_info = jax.random.normal(ka, (N, FLOW_LAYERS * 2 * D), dtype=jnp.float32)

    # Deterministic parameter init mirroring NaiveLinear.__init__:
    # weight ~ U(-1/sqrt(8), 1/sqrt(8)), bias = 0.
    stdv = 1.0 / np.sqrt(8.0)
    weights = jax.random.uniform(
        kw, (FLOW_LAYERS + 1, D, D), minval=-stdv, maxval=stdv, dtype=jnp.float32
    )
    biases = jnp.zeros((FLOW_LAYERS + 1, D), dtype=jnp.float32)

    z, logdet = flow_forward(x, affine_info, weights, biases, tn=512)
    jax.block_until_ready((z, logdet))

    z_ref, logdet_ref = flow_reference(x, affine_info, weights, biases)
    assert z.shape == (N, D) and logdet.shape == (N,)
    assert jnp.allclose(z, z_ref, atol=1e-5, rtol=1e-5)
    assert jnp.allclose(logdet, logdet_ref, atol=1e-4, rtol=1e-4)

    print("KERNEL_OK")
</pallas_src>

<mosaic_0001>
module attributes {stable_mosaic.version = 11 : i64} {
  func.func @flow_kernel(%arg0: i32, %arg1: memref<99xf32, #tpu.memory_space<smem>>, %arg2: memref<33xf32, #tpu.memory_space<smem>>, %arg3: memref<1xf32, #tpu.memory_space<smem>>, %arg4: memref<3x512xf32, #tpu.memory_space<vmem>>, %arg5: memref<60x512xf32, #tpu.memory_space<vmem>>, %arg6: memref<3x512xf32, #tpu.memory_space<vmem>>, %arg7: memref<1x512xf32, #tpu.memory_space<vmem>>) attributes {dimension_semantics = [#tpu.dimension_semantics<parallel>], iteration_bounds = array<i64: 2>, scalar_prefetch = 0 : i64, scratch_operands = 0 : i64, tpu.core_type = #tpu.core_type<tc>, window_params = [{transform_indices = @transform_0, window_bounds = array<i64: 99>}, {transform_indices = @transform_1, window_bounds = array<i64: 33>}, {transform_indices = @transform_2, window_bounds = array<i64: 1>}, {transform_indices = @transform_3, window_bounds = array<i64: 3, 512>}, {transform_indices = @transform_4, window_bounds = array<i64: 60, 512>}, {transform_indices = @transform_5, window_bounds = array<i64: 3, 512>}, {transform_indices = @transform_6, window_bounds = array<i64: 1, 512>}]} {
    %c0 = arith.constant 0 : index
    %c0_0 = arith.constant 0 : index
    %0 = vector.load %arg4[%c0, %c0_0] : memref<3x512xf32, #tpu.memory_space<vmem>>, vector<1x512xf32>
    %c1 = arith.constant 1 : index
    %c0_1 = arith.constant 0 : index
    %1 = vector.load %arg4[%c1, %c0_1] : memref<3x512xf32, #tpu.memory_space<vmem>>, vector<1x512xf32>
    %c2 = arith.constant 2 : index
    %c0_2 = arith.constant 0 : index
    %2 = vector.load %arg4[%c2, %c0_2] : memref<3x512xf32, #tpu.memory_space<vmem>>, vector<1x512xf32>
    %cst = arith.constant 0.000000e+00 : f32
    %3 = vector.broadcast %cst : f32 to vector<1x512xf32>
    %c0_3 = arith.constant 0 : index
    %4 = memref.load %arg1[%c0_3] : memref<99xf32, #tpu.memory_space<smem>>
    %5 = vector.broadcast %4 : f32 to vector<1x512xf32>
    %6 = arith.mulf %0, %5 : vector<1x512xf32>
    %c0_4 = arith.constant 0 : index
    %7 = memref.load %arg2[%c0_4] : memref<33xf32, #tpu.memory_space<smem>>
    %8 = vector.broadcast %7 : f32 to vector<1x512xf32>
    %9 = arith.addf %6, %8 : vector<1x512xf32>
    %c1_5 = arith.constant 1 : index
    %10 = memref.load %arg1[%c1_5] : memref<99xf32, #tpu.memory_space<smem>>
    %11 = vector.broadcast %10 : f32 to vector<1x512xf32>
    %12 = arith.mulf %1, %11 : vector<1x512xf32>
    %13 = arith.addf %9, %12 : vector<1x512xf32>
    %c2_6 = arith.constant 2 : index
    %14 = memref.load %arg1[%c2_6] : memref<99xf32, #tpu.memory_space<smem>>
    %15 = vector.broadcast %14 : f32 to vector<1x512xf32>
    %16 = arith.mulf %2, %15 : vector<1x512xf32>
    %17 = arith.addf %13, %16 : vector<1x512xf32>
    %c3 = arith.constant 3 : index
    %18 = memref.load %arg1[%c3] : memref<99xf32, #tpu.memory_space<smem>>
    %19 = vector.broadcast %18 : f32 to vector<1x512xf32>
    %20 = arith.mulf %0, %19 : vector<1x512xf32>
    %c1_7 = arith.constant 1 : index
    %21 = memref.load %arg2[%c1_7] : memref<33xf32, #tpu.memory_space<smem>>
    %22 = vector.broadcast %21 : f32 to vector<1x512xf32>
    %23 = arith.addf %20, %22 : vector<1x512xf32>
    %c4 = arith.constant 4 : index
    %24 = memref.load %arg1[%c4] : memref<99xf32, #tpu.memory_space<smem>>
    %25 = vector.broadcast %24 : f32 to vector<1x512xf32>
    %26 = arith.mulf %1, %25 : vector<1x512xf32>
    %27 = arith.addf %23, %26 : vector<1x512xf32>
    %c5 = arith.constant 5 : index
    %28 = memref.load %arg1[%c5] : memref<99xf32, #tpu.memory_space<smem>>
    %29 = vector.broadcast %28 : f32 to vector<1x512xf32>
    %30 = arith.mulf %2, %29 : vector<1x512xf32>
    %31 = arith.addf %27, %30 : vector<1x512xf32>
    %c6 = arith.constant 6 : index
    %32 = memref.load %arg1[%c6] : memref<99xf32, #tpu.memory_space<smem>>
    %33 = vector.broadcast %32 : f32 to vector<1x512xf32>
    %34 = arith.mulf %0, %33 : vector<1x512xf32>
    %c2_8 = arith.constant 2 : index
    %35 = memref.load %arg2[%c2_8] : memref<33xf32, #tpu.memory_space<smem>>
    %36 = vector.broadcast %35 : f32 to vector<1x512xf32>
    %37 = arith.addf %34, %36 : vector<1x512xf32>
    %c7 = arith.constant 7 : index
    %38 = memref.load %arg1[%c7] : memref<99xf32, #tpu.memory_space<smem>>
    %39 = vector.broadcast %38 : f32 to vector<1x512xf32>
    %40 = arith.mulf %1, %39 : vector<1x512xf32>
    %41 = arith.addf %37, %40 : vector<1x512xf32>
    %c8 = arith.constant 8 : index
    %42 = memref.load %arg1[%c8] : memref<99xf32, #tpu.memory_space<smem>>
    %43 = vector.broadcast %42 : f32 to vector<1x512xf32>
    %44 = arith.mulf %2, %43 : vector<1x512xf32>
    %45 = arith.addf %41, %44 : vector<1x512xf32>
    %c0_9 = arith.constant 0 : index
    %c0_10 = arith.constant 0 : index
    %46 = vector.load %arg5[%c0_9, %c0_10] : memref<60x512xf32, #tpu.memory_space<vmem>>, vector<1x512xf32>
    %cst_11 = arith.constant 2.000000e+00 : f32
    %47 = vector.broadcast %cst_11 : f32 to vector<1x512xf32>
    %48 = arith.addf %46, %47 : vector<1x512xf32>
    %49 = arith.negf %48 : vector<1x512xf32>
    %50 = math.exp %49 : vector<1x512xf32>
    %cst_12 = arith.constant 1.000000e+00 : f32
    %51 = vector.broadcast %cst_12 : f32 to vector<1x512xf32>
    %52 = arith.addf %51, %50 : vector<1x512xf32>
    %53 = arith.divf %51, %52 : vector<1x512xf32>
    %cst_13 = arith.constant 9.99999974E-5 : f32
    %54 = vector.broadcast %cst_13 : f32 to vector<1x512xf32>
    %55 = arith.addf %53, %54 : vector<1x512xf32>
    %56 = arith.mulf %17, %55 : vector<1x512xf32>
    %c3_14 = arith.constant 3 : index
    %c0_15 = arith.constant 0 : index
    %57 = vector.load %arg5[%c3_14, %c0_15] : memref<60x512xf32, #tpu.memory_space<vmem>>, vector<1x512xf32>
    %58 = arith.addf %56, %57 : vector<1x512xf32>
    %59 = math.log %55 : vector<1x512xf32>
    %60 = arith.addf %3, %59 : vector<1x512xf32>
    %c1_16 = arith.constant 1 : index
    %c0_17 = arith.constant 0 : index
    %61 = vector.load %arg5[%c1_16, %c0_17] : memref<60x512xf32, #tpu.memory_space<vmem>>, vector<1x512xf32>
    %cst_18 = arith.constant 2.000000e+00 : f32
    %62 = vector.broadcast %cst_18 : f32 to vector<1x512xf32>
    %63 = arith.addf %61, %62 : vector<1x512xf32>
    %64 = arith.negf %63 : vector<1x512xf32>
    %65 = math.exp %64 : vector<1x512xf32>
    %cst_19 = arith.constant 1.000000e+00 : f32
    %66 = vector.broadcast %cst_19 : f32 to vector<1x512xf32>
    %67 = arith.addf %66, %65 : vector<1x512xf32>
    %68 = arith.divf %66, %67 : vector<1x512xf32>
    %cst_20 = arith.constant 9.99999974E-5 : f32
    %69 = vector.broadcast %cst_20 : f32 to vector<1x512xf32>
    %70 = arith.addf %68, %69 : vector<1x512xf32>
    %71 = arith.mulf %31, %70 : vector<1x512xf32>
    %c4_21 = arith.constant 4 : index
    %c0_22 = arith.constant 0 : index
    %72 = vector.load %arg5[%c4_21, %c0_22] : memref<60x512xf32, #tpu.memory_space<vmem>>, vector<1x512xf32>
    %73 = arith.addf %71, %72 : vector<1x512xf32>
    %74 = math.log %70 : vector<1x512xf32>
    %75 = arith.addf %60, %74 : vector<1x512xf32>
    %c2_23 = arith.constant 2 : index
    %c0_24 = arith.constant 0 : index
    %76 = vector.load %arg5[%c2_23, %c0_24] : memref<60x512xf32, #tpu.memory_space<vmem>>, vector<1x512xf32>
    %cst_25 = arith.constant 2.000000e+00 : f32
    %77 = vector.broadcast %cst_25 : f32 to vector<1x512xf32>
    %78 = arith.addf %76, %77 : vector<1x512xf32>
    %79 = arith.negf %78 : vector<1x512xf32>
    %80 = math.exp %79 : vector<1x512xf32>
    %cst_26 = arith.constant 1.000000e+00 : f32
    %81 = vector.broadcast %cst_26 : f32 to vector<1x512xf32>
    %82 = arith.addf %81, %80 : vector<1x512xf32>
    %83 = arith.divf %81, %82 : vector<1x512xf32>
    %cst_27 = arith.constant 9.99999974E-5 : f32
    %84 = vector.broadcast %cst_27 : f32 to vector<1x512xf32>
    %85 = arith.addf %83, %84 : vector<1x512xf32>
    %86 = arith.mulf %45, %85 : vector<1x512xf32>
    %c5_28 = arith.constant 5 : index
    %c0_29 = arith.constant 0 : index
    %87 = vector.load %arg5[%c5_28, %c0_29] : memref<60x512xf32, #tpu.memory_space<vmem>>, vector<1x512xf32>
    %88 = arith.addf %86, %87 : vector<1x512xf32>
    %89 = math.log %85 : vector<1x512xf32>
    %90 = arith.addf %75, %89 : vector<1x512xf32>
    %c9 = arith.constant 9 : index
    %91 = memref.load %arg1[%c9] : memref<99xf32, #tpu.memory_space<smem>>
    %92 = vector.broadcast %91 : f32 to vector<1x512xf32>
    %93 = arith.mulf %58, %92 : vector<1x512xf32>
    %c3_30 = arith.constant 3 : index
    %94 = memref.load %arg2[%c3_30] : memref<33xf32, #tpu.memory_space<smem>>
    %95 = vector.broadcast %94 : f32 to vector<1x512xf32>
    %96 = arith.addf %93, %95 : vector<1x512xf32>
    %c10 = arith.constant 10 : index
    %97 = memref.load %arg1[%c10] : memref<99xf32, #tpu.memory_space<smem>>
    %98 = vector.broadcast %97 : f32 to vector<1x512xf32>
    %99 = arith.mulf %73, %98 : vector<1x512xf32>
    %100 = arith.addf %96, %99 : vector<1x512xf32>
    %c11 = arith.constant 11 : index
    %101 = memref.load %arg1[%c11] : memref<99xf32, #tpu.memory_space<smem>>
    %102 = vector.broadcast %101 : f32 to vector<1x512xf32>
    %103 = arith.mulf %88, %102 : vector<1x512xf32>
    %104 = arith.addf %100, %103 : vector<1x512xf32>
    %c12 = arith.constant 12 : index
    %105 = memref.load %arg1[%c12] : memref<99xf32, #tpu.memory_space<smem>>
    %106 = vector.broadcast %105 : f32 to vector<1x512xf32>
    %107 = arith.mulf %58, %106 : vector<1x512xf32>
    %c4_31 = arith.constant 4 : index
    %108 = memref.load %arg2[%c4_31] : memref<33xf32, #tpu.memory_space<smem>>
    %109 = vector.broadcast %108 : f32 to vector<1x512xf32>
    %110 = arith.addf %107, %109 : vector<1x512xf32>
    %c13 = arith.constant 13 : index
    %111 = memref.load %arg1[%c13] : memref<99xf32, #tpu.memory_space<smem>>
    %112 = vector.broadcast %111 : f32 to vector<1x512xf32>
    %113 = arith.mulf %73, %112 : vector<1x512xf32>
    %114 = arith.addf %110, %113 : vector<1x512xf32>
    %c14 = arith.constant 14 : index
    %115 = memref.load %arg1[%c14] : memref<99xf32, #tpu.memory_space<smem>>
    %116 = vector.broadcast %115 : f32 to vector<1x512xf32>
    %117 = arith.mulf %88, %116 : vector<1x512xf32>
    %118 = arith.addf %114, %117 : vector<1x512xf32>
    %c15 = arith.constant 15 : index
    %119 = memref.load %arg1[%c15] : memref<99xf32, #tpu.memory_space<smem>>
    %120 = vector.broadcast %119 : f32 to vector<1x512xf32>
    %121 = arith.mulf %58, %120 : vector<1x512xf32>
    %c5_32 = arith.constant 5 : index
    %122 = memref.load %arg2[%c5_32] : memref<33xf32, #tpu.memory_space<smem>>
    %123 = vector.broadcast %122 : f32 to vector<1x512xf32>
    %124 = arith.addf %121, %123 : vector<1x512xf32>
    %c16 = arith.constant 16 : index
    %125 = memref.load %arg1[%c16] : memref<99xf32, #tpu.memory_space<smem>>
    %126 = vector.broadcast %125 : f32 to vector<1x512xf32>
    %127 = arith.mulf %73, %126 : vector<1x512xf32>
    %128 = arith.addf %124, %127 : vector<1x512xf32>
    %c17 = arith.constant 17 : index
    %129 = memref.load %arg1[%c17] : memref<99xf32, #tpu.memory_space<smem>>
    %130 = vector.broadcast %129 : f32 to vector<1x512xf32>
    %131 = arith.mulf %88, %130 : vector<1x512xf32>
    %132 = arith.addf %128, %131 : vector<1x512xf32>
    %c6_33 = arith.constant 6 : index
    %c0_34 = arith.constant 0 : index
    %133 = vector.load %arg5[%c6_33, %c0_34] : memref<60x512xf32, #tpu.memory_space<vmem>>, vector<1x512xf32>
    %cst_35 = arith.constant 2.000000e+00 : f32
    %134 = vector.broadcast %cst_35 : f32 to vector<1x512xf32>
    %135 = arith.addf %133, %134 : vector<1x512xf32>
    %136 = arith.negf %135 : vector<1x512xf32>
    %137 = math.exp %136 : vector<1x512xf32>
    %cst_36 = arith.constant 1.000000e+00 : f32
    %138 = vector.broadcast %cst_36 : f32 to vector<1x512xf32>
    %139 = arith.addf %138, %137 : vector<1x512xf32>
    %140 = arith.divf %138, %139 : vector<1x512xf32>
    %cst_37 = arith.constant 9.99999974E-5 : f32
    %141 = vector.broadcast %cst_37 : f32 to vector<1x512xf32>
    %142 = arith.addf %140, %141 : vector<1x512xf32>
    %143 = arith.mulf %104, %142 : vector<1x512xf32>
    %c9_38 = arith.constant 9 : index
    %c0_39 = arith.constant 0 : index
    %144 = vector.load %arg5[%c9_38, %c0_39] : memref<60x512xf32, #tpu.memory_space<vmem>>, vector<1x512xf32>
    %145 = arith.addf %143, %144 : vector<1x512xf32>
    %146 = math.log %142 : vector<1x512xf32>
    %147 = arith.addf %90, %146 : vector<1x512xf32>
    %c7_40 = arith.constant 7 : index
    %c0_41 = arith.constant 0 : index
    %148 = vector.load %arg5[%c7_40, %c0_41] : memref<60x512xf32, #tpu.memory_space<vmem>>, vector<1x512xf32>
    %cst_42 = arith.constant 2.000000e+00 : f32
    %149 = vector.broadcast %cst_42 : f32 to vector<1x512xf32>
    %150 = arith.addf %148, %149 : vector<1x512xf32>
    %151 = arith.negf %150 : vector<1x512xf32>
    %152 = math.exp %151 : vector<1x512xf32>
    %cst_43 = arith.constant 1.000000e+00 : f32
    %153 = vector.broadcast %cst_43 : f32 to vector<1x512xf32>
    %154 = arith.addf %153, %152 : vector<1x512xf32>
    %155 = arith.divf %153, %154 : vector<1x512xf32>
    %cst_44 = arith.constant 9.99999974E-5 : f32
    %156 = vector.broadcast %cst_44 : f32 to vector<1x512xf32>
    %157 = arith.addf %155, %156 : vector<1x512xf32>
    %158 = arith.mulf %118, %157 : vector<1x512xf32>
    %c10_45 = arith.constant 10 : index
    %c0_46 = arith.constant 0 : index
    %159 = vector.load %arg5[%c10_45, %c0_46] : memref<60x512xf32, #tpu.memory_space<vmem>>, vector<1x512xf32>
    %160 = arith.addf %158, %159 : vector<1x512xf32>
    %161 = math.log %157 : vector<1x512xf32>
    %162 = arith.addf %147, %161 : vector<1x512xf32>
    %c8_47 = arith.constant 8 : index
    %c0_48 = arith.constant 0 : index
    %163 = vector.load %arg5[%c8_47, %c0_48] : memref<60x512xf32, #tpu.memory_space<vmem>>, vector<1x512xf32>
    %cst_49 = arith.constant 2.000000e+00 : f32
    %164 = vector.broadcast %cst_49 : f32 to vector<1x512xf32>
    %165 = arith.addf %163, %164 : vector<1x512xf32>
    %166 = arith.negf %165 : vector<1x512xf32>
    %167 = math.exp %166 : vector<1x512xf32>
    %cst_50 = arith.constant 1.000000e+00 : f32
    %168 = vector.broadcast %cst_50 : f32 to vector<1x512xf32>
    %169 = arith.addf %168, %167 : vector<1x512xf32>
    %170 = arith.divf %168, %169 : vector<1x512xf32>
    %cst_51 = arith.constant 9.99999974E-5 : f32
    %171 = vector.broadcast %cst_51 : f32 to vector<1x512xf32>
    %172 = arith.addf %170, %171 : vector<1x512xf32>
    %173 = arith.mulf %132, %172 : vector<1x512xf32>
    %c11_52 = arith.constant 11 : index
    %c0_53 = arith.constant 0 : index
    %174 = vector.load %arg5[%c11_52, %c0_53] : memref<60x512xf32, #tpu.memory_space<vmem>>, vector<1x512xf32>
    %175 = arith.addf %173, %174 : vector<1x512xf32>
    %176 = math.log %172 : vector<1x512xf32>
    %177 = arith.addf %162, %176 : vector<1x512xf32>
    %c18 = arith.constant 18 : index
    %178 = memref.load %arg1[%c18] : memref<99xf32, #tpu.memory_space<smem>>
    %179 = vector.broadcast %178 : f32 to vector<1x512xf32>
    %180 = arith.mulf %145, %179 : vector<1x512xf32>
    %c6_54 = arith.constant 6 : index
    %181 = memref.load %arg2[%c6_54] : memref<33xf32, #tpu.memory_space<smem>>
    %182 = vector.broadcast %181 : f32 to vector<1x512xf32>
    %183 = arith.addf %180, %182 : vector<1x512xf32>
    %c19 = arith.constant 19 : index
    %184 = memref.load %arg1[%c19] : memref<99xf32, #tpu.memory_space<smem>>
    %185 = vector.broadcast %184 : f32 to vector<1x512xf32>
    %186 = arith.mulf %160, %185 : vector<1x512xf32>
    %187 = arith.addf %183, %186 : vector<1x512xf32>
    %c20 = arith.constant 20 : index
    %188 = memref.load %arg1[%c20] : memref<99xf32, #tpu.memory_space<smem>>
    %189 = vector.broadcast %188 : f32 to vector<1x512xf32>
    %190 = arith.mulf %175, %189 : vector<1x512xf32>
    %191 = arith.addf %187, %190 : vector<1x512xf32>
    %c21 = arith.constant 21 : index
    %192 = memref.load %arg1[%c21] : memref<99xf32, #tpu.memory_space<smem>>
    %193 = vector.broadcast %192 : f32 to vector<1x512xf32>
    %194 = arith.mulf %145, %193 : vector<1x512xf32>
    %c7_55 = arith.constant 7 : index
    %195 = memref.load %arg2[%c7_55] : memref<33xf32, #tpu.memory_space<smem>>
    %196 = vector.broadcast %195 : f32 to vector<1x512xf32>
    %197 = arith.addf %194, %196 : vector<1x512xf32>
    %c22 = arith.constant 22 : index
    %198 = memref.load %arg1[%c22] : memref<99xf32, #tpu.memory_space<smem>>
    %199 = vector.broadcast %198 : f32 to vector<1x512xf32>
    %200 = arith.mulf %160, %199 : vector<1x512xf32>
    %201 = arith.addf %197, %200 : vector<1x512xf32>
    %c23 = arith.constant 23 : index
    %202 = memref.load %arg1[%c23] : memref<99xf32, #tpu.memory_space<smem>>
    %203 = vector.broadcast %202 : f32 to vector<1x512xf32>
    %204 = arith.mulf %175, %203 : vector<1x512xf32>
    %205 = arith.addf %201, %204 : vector<1x512xf32>
    %c24 = arith.constant 24 : index
    %206 = memref.load %arg1[%c24] : memref<99xf32, #tpu.memory_space<smem>>
    %207 = vector.broadcast %206 : f32 to vector<1x512xf32>
    %208 = arith.mulf %145, %207 : vector<1x512xf32>
    %c8_56 = arith.constant 8 : index
    %209 = memref.load %arg2[%c8_56] : memref<33xf32, #tpu.memory_space<smem>>
    %210 = vector.broadcast %209 : f32 to vector<1x512xf32>
    %211 = arith.addf %208, %210 : vector<1x512xf32>
    %c25 = arith.constant 25 : index
    %212 = memref.load %arg1[%c25] : memref<99xf32, #tpu.memory_space<smem>>
    %213 = vector.broadcast %212 : f32 to vector<1x512xf32>
    %214 = arith.mulf %160, %213 : vector<1x512xf32>
    %215 = arith.addf %211, %214 : vector<1x512xf32>
    %c26 = arith.constant 26 : index
    %216 = memref.load %arg1[%c26] : memref<99xf32, #tpu.memory_space<smem>>
    %217 = vector.broadcast %216 : f32 to vector<1x512xf32>
    %218 = arith.mulf %175, %217 : vector<1x512xf32>
    %219 = arith.addf %215, %218 : vector<1x512xf32>
    %c12_57 = arith.constant 12 : index
    %c0_58 = arith.constant 0 : index
    %220 = vector.load %arg5[%c12_57, %c0_58] : memref<60x512xf32, #tpu.memory_space<vmem>>, vector<1x512xf32>
    %cst_59 = arith.constant 2.000000e+00 : f32
    %221 = vector.broadcast %cst_59 : f32 to vector<1x512xf32>
    %222 = arith.addf %220, %221 : vector<1x512xf32>
    %223 = arith.negf %222 : vector<1x512xf32>
    %224 = math.exp %223 : vector<1x512xf32>
    %cst_60 = arith.constant 1.000000e+00 : f32
    %225 = vector.broadcast %cst_60 : f32 to vector<1x512xf32>
    %226 = arith.addf %225, %224 : vector<1x512xf32>
    %227 = arith.divf %225, %226 : vector<1x512xf32>
    %cst_61 = arith.constant 9.99999974E-5 : f32
    %228 = vector.broadcast %cst_61 : f32 to vector<1x512xf32>
    %229 = arith.addf %227, %228 : vector<1x512xf32>
    %230 = arith.mulf %191, %229 : vector<1x512xf32>
    %c15_62 = arith.constant 15 : index
    %c0_63 = arith.constant 0 : index
    %231 = vector.load %arg5[%c15_62, %c0_63] : memref<60x512xf32, #tpu.memory_space<vmem>>, vector<1x512xf32>
    %232 = arith.addf %230, %231 : vector<1x512xf32>
    %233 = math.log %229 : vector<1x512xf32>
    %234 = arith.addf %177, %233 : vector<1x512xf32>
    %c13_64 = arith.constant 13 : index
    %c0_65 = arith.constant 0 : index
    %235 = vector.load %arg5[%c13_64, %c0_65] : memref<60x512xf32, #tpu.memory_space<vmem>>, vector<1x512xf32>
    %cst_66 = arith.constant 2.000000e+00 : f32
    %236 = vector.broadcast %cst_66 : f32 to vector<1x512xf32>
    %237 = arith.addf %235, %236 : vector<1x512xf32>
    %238 = arith.negf %237 : vector<1x512xf32>
    %239 = math.exp %238 : vector<1x512xf32>
    %cst_67 = arith.constant 1.000000e+00 : f32
    %240 = vector.broadcast %cst_67 : f32 to vector<1x512xf32>
    %241 = arith.addf %240, %239 : vector<1x512xf32>
    %242 = arith.divf %240, %241 : vector<1x512xf32>
    %cst_68 = arith.constant 9.99999974E-5 : f32
    %243 = vector.broadcast %cst_68 : f32 to vector<1x512xf32>
    %244 = arith.addf %242, %243 : vector<1x512xf32>
    %245 = arith.mulf %205, %244 : vector<1x512xf32>
    %c16_69 = arith.constant 16 : index
    %c0_70 = arith.constant 0 : index
    %246 = vector.load %arg5[%c16_69, %c0_70] : memref<60x512xf32, #tpu.memory_space<vmem>>, vector<1x512xf32>
    %247 = arith.addf %245, %246 : vector<1x512xf32>
    %248 = math.log %244 : vector<1x512xf32>
    %249 = arith.addf %234, %248 : vector<1x512xf32>
    %c14_71 = arith.constant 14 : index
    %c0_72 = arith.constant 0 : index
    %250 = vector.load %arg5[%c14_71, %c0_72] : memref<60x512xf32, #tpu.memory_space<vmem>>, vector<1x512xf32>
    %cst_73 = arith.constant 2.000000e+00 : f32
    %251 = vector.broadcast %cst_73 : f32 to vector<1x512xf32>
    %252 = arith.addf %250, %251 : vector<1x512xf32>
    %253 = arith.negf %252 : vector<1x512xf32>
    %254 = math.exp %253 : vector<1x512xf32>
    %cst_74 = arith.constant 1.000000e+00 : f32
    %255 = vector.broadcast %cst_74 : f32 to vector<1x512xf32>
    %256 = arith.addf %255, %254 : vector<1x512xf32>
    %257 = arith.divf %255, %256 : vector<1x512xf32>
    %cst_75 = arith.constant 9.99999974E-5 : f32
    %258 = vector.broadcast %cst_75 : f32 to vector<1x512xf32>
    %259 = arith.addf %257, %258 : vector<1x512xf32>
    %260 = arith.mulf %219, %259 : vector<1x512xf32>
    %c17_76 = arith.constant 17 : index
    %c0_77 = arith.constant 0 : index
    %261 = vector.load %arg5[%c17_76, %c0_77] : memref<60x512xf32, #tpu.memory_space<vmem>>, vector<1x512xf32>
    %262 = arith.addf %260, %261 : vector<1x512xf32>
    %263 = math.log %259 : vector<1x512xf32>
    %264 = arith.addf %249, %263 : vector<1x512xf32>
    %c27 = arith.constant 27 : index
    %265 = memref.load %arg1[%c27] : memref<99xf32, #tpu.memory_space<smem>>
    %266 = vector.broadcast %265 : f32 to vector<1x512xf32>
    %267 = arith.mulf %232, %266 : vector<1x512xf32>
    %c9_78 = arith.constant 9 : index
    %268 = memref.load %arg2[%c9_78] : memref<33xf32, #tpu.memory_space<smem>>
    %269 = vector.broadcast %268 : f32 to vector<1x512xf32>
    %270 = arith.addf %267, %269 : vector<1x512xf32>
    %c28 = arith.constant 28 : index
    %271 = memref.load %arg1[%c28] : memref<99xf32, #tpu.memory_space<smem>>
    %272 = vector.broadcast %271 : f32 to vector<1x512xf32>
    %273 = arith.mulf %247, %272 : vector<1x512xf32>
    %274 = arith.addf %270, %273 : vector<1x512xf32>
    %c29 = arith.constant 29 : index
    %275 = memref.load %arg1[%c29] : memref<99xf32, #tpu.memory_space<smem>>
    %276 = vector.broadcast %275 : f32 to vector<1x512xf32>
    %277 = arith.mulf %262, %276 : vector<1x512xf32>
    %278 = arith.addf %274, %277 : vector<1x512xf32>
    %c30 = arith.constant 30 : index
    %279 = memref.load %arg1[%c30] : memref<99xf32, #tpu.memory_space<smem>>
    %280 = vector.broadcast %279 : f32 to vector<1x512xf32>
    %281 = arith.mulf %232, %280 : vector<1x512xf32>
    %c10_79 = arith.constant 10 : index
    %282 = memref.load %arg2[%c10_79] : memref<33xf32, #tpu.memory_space<smem>>
    %283 = vector.broadcast %282 : f32 to vector<1x512xf32>
    %284 = arith.addf %281, %283 : vector<1x512xf32>
    %c31 = arith.constant 31 : index
    %285 = memref.load %arg1[%c31] : memref<99xf32, #tpu.memory_space<smem>>
    %286 = vector.broadcast %285 : f32 to vector<1x512xf32>
    %287 = arith.mulf %247, %286 : vector<1x512xf32>
    %288 = arith.addf %284, %287 : vector<1x512xf32>
    %c32 = arith.constant 32 : index
    %289 = memref.load %arg1[%c32] : memref<99xf32, #tpu.memory_space<smem>>
    %290 = vector.broadcast %289 : f32 to vector<1x512xf32>
    %291 = arith.mulf %262, %290 : vector<1x512xf32>
    %292 = arith.addf %288, %291 : vector<1x512xf32>
    %c33 = arith.constant 33 : index
    %293 = memref.load %arg1[%c33] : memref<99xf32, #tpu.memory_space<smem>>
    %294 = vector.broadcast %293 : f32 to vector<1x512xf32>
    %295 = arith.mulf %232, %294 : vector<1x512xf32>
    %c11_80 = arith.constant 11 : index
    %296 = memref.load %arg2[%c11_80] : memref<33xf32, #tpu.memory_space<smem>>
    %297 = vector.broadcast %296 : f32 to vector<1x512xf32>
    %298 = arith.addf %295, %297 : vector<1x512xf32>
    %c34 = arith.constant 34 : index
    %299 = memref.load %arg1[%c34] : memref<99xf32, #tpu.memory_space<smem>>
    %300 = vector.broadcast %299 : f32 to vector<1x512xf32>
    %301 = arith.mulf %247, %300 : vector<1x512xf32>
    %302 = arith.addf %298, %301 : vector<1x512xf32>
    %c35 = arith.constant 35 : index
    %303 = memref.load %arg1[%c35] : memref<99xf32, #tpu.memory_space<smem>>
    %304 = vector.broadcast %303 : f32 to vector<1x512xf32>
    %305 = arith.mulf %262, %304 : vector<1x512xf32>
    %306 = arith.addf %302, %305 : vector<1x512xf32>
    %c18_81 = arith.constant 18 : index
    %c0_82 = arith.constant 0 : index
    %307 = vector.load %arg5[%c18_81, %c0_82] : memref<60x512xf32, #tpu.memory_space<vmem>>, vector<1x512xf32>
    %cst_83 = arith.constant 2.000000e+00 : f32
    %308 = vector.broadcast %cst_83 : f32 to vector<1x512xf32>
    %309 = arith.addf %307, %308 : vector<1x512xf32>
    %310 = arith.negf %309 : vector<1x512xf32>
    %311 = math.exp %310 : vector<1x512xf32>
    %cst_84 = arith.constant 1.000000e+00 : f32
    %312 = vector.broadcast %cst_84 : f32 to vector<1x512xf32>
    %313 = arith.addf %312, %311 : vector<1x512xf32>
    %314 = arith.divf %312, %313 : vector<1x512xf32>
    %cst_85 = arith.constant 9.99999974E-5 : f32
    %315 = vector.broadcast %cst_85 : f32 to vector<1x512xf32>
    %316 = arith.addf %314, %315 : vector<1x512xf32>
    %317 = arith.mulf %278, %316 : vector<1x512xf32>
    %c21_86 = arith.constant 21 : index
    %c0_87 = arith.constant 0 : index
    %318 = vector.load %arg5[%c21_86, %c0_87] : memref<60x512xf32, #tpu.memory_space<vmem>>, vector<1x512xf32>
    %319 = arith.addf %317, %318 : vector<1x512xf32>
    %320 = math.log %316 : vector<1x512xf32>
    %321 = arith.addf %264, %320 : vector<1x512xf32>
    %c19_88 = arith.constant 19 : index
    %c0_89 = arith.constant 0 : index
    %322 = vector.load %arg5[%c19_88, %c0_89] : memref<60x512xf32, #tpu.memory_space<vmem>>, vector<1x512xf32>
    %cst_90 = arith.constant 2.000000e+00 : f32
    %323 = vector.broadcast %cst_90 : f32 to vector<1x512xf32>
    %324 = arith.addf %322, %323 : vector<1x512xf32>
    %325 = arith.negf %324 : vector<1x512xf32>
    %326 = math.exp %325 : vector<1x512xf32>
    %cst_91 = arith.constant 1.000000e+00 : f32
    %327 = vector.broadcast %cst_91 : f32 to vector<1x512xf32>
    %328 = arith.addf %327, %326 : vector<1x512xf32>
    %329 = arith.divf %327, %328 : vector<1x512xf32>
    %cst_92 = arith.constant 9.99999974E-5 : f32
    %330 = vector.broadcast %cst_92 : f32 to vector<1x512xf32>
    %331 = arith.addf %329, %330 : vector<1x512xf32>
    %332 = arith.mulf %292, %331 : vector<1x512xf32>
    %c22_93 = arith.constant 22 : index
    %c0_94 = arith.constant 0 : index
    %333 = vector.load %arg5[%c22_93, %c0_94] : memref<60x512xf32, #tpu.memory_space<vmem>>, vector<1x512xf32>
    %334 = arith.addf %332, %333 : vector<1x512xf32>
    %335 = math.log %331 : vector<1x512xf32>
    %336 = arith.addf %321, %335 : vector<1x512xf32>
    %c20_95 = arith.constant 20 : index
    %c0_96 = arith.constant 0 : index
    %337 = vector.load %arg5[%c20_95, %c0_96] : memref<60x512xf32, #tpu.memory_space<vmem>>, vector<1x512xf32>
    %cst_97 = arith.constant 2.000000e+00 : f32
    %338 = vector.broadcast %cst_97 : f32 to vector<1x512xf32>
    %339 = arith.addf %337, %338 : vector<1x512xf32>
    %340 = arith.negf %339 : vector<1x512xf32>
    %341 = math.exp %340 : vector<1x512xf32>
    %cst_98 = arith.constant 1.000000e+00 : f32
    %342 = vector.broadcast %cst_98 : f32 to vector<1x512xf32>
    %343 = arith.addf %342, %341 : vector<1x512xf32>
    %344 = arith.divf %342, %343 : vector<1x512xf32>
    %cst_99 = arith.constant 9.99999974E-5 : f32
    %345 = vector.broadcast %cst_99 : f32 to vector<1x512xf32>
    %346 = arith.addf %344, %345 : vector<1x512xf32>
    %347 = arith.mulf %306, %346 : vector<1x512xf32>
    %c23_100 = arith.constant 23 : index
    %c0_101 = arith.constant 0 : index
    %348 = vector.load %arg5[%c23_100, %c0_101] : memref<60x512xf32, #tpu.memory_space<vmem>>, vector<1x512xf32>
    %349 = arith.addf %347, %348 : vector<1x512xf32>
    %350 = math.log %346 : vector<1x512xf32>
    %351 = arith.addf %336, %350 : vector<1x512xf32>
    %c36 = arith.constant 36 : index
    %352 = memref.load %arg1[%c36] : memref<99xf32, #tpu.memory_space<smem>>
    %353 = vector.broadcast %352 : f32 to vector<1x512xf32>
    %354 = arith.mulf %319, %353 : vector<1x512xf32>
    %c12_102 = arith.constant 12 : index
    %355 = memref.load %arg2[%c12_102] : memref<33xf32, #tpu.memory_space<smem>>
    %356 = vector.broadcast %355 : f32 to vector<1x512xf32>
    %357 = arith.addf %354, %356 : vector<1x512xf32>
    %c37 = arith.constant 37 : index
    %358 = memref.load %arg1[%c37] : memref<99xf32, #tpu.memory_space<smem>>
    %359 = vector.broadcast %358 : f32 to vector<1x512xf32>
    %360 = arith.mulf %334, %359 : vector<1x512xf32>
    %361 = arith.addf %357, %360 : vector<1x512xf32>
    %c38 = arith.constant 38 : index
    %362 = memref.load %arg1[%c38] : memref<99xf32, #tpu.memory_space<smem>>
    %363 = vector.broadcast %362 : f32 to vector<1x512xf32>
    %364 = arith.mulf %349, %363 : vector<1x512xf32>
    %365 = arith.addf %361, %364 : vector<1x512xf32>
    %c39 = arith.constant 39 : index
    %366 = memref.load %arg1[%c39] : memref<99xf32, #tpu.memory_space<smem>>
    %367 = vector.broadcast %366 : f32 to vector<1x512xf32>
    %368 = arith.mulf %319, %367 : vector<1x512xf32>
    %c13_103 = arith.constant 13 : index
    %369 = memref.load %arg2[%c13_103] : memref<33xf32, #tpu.memory_space<smem>>
    %370 = vector.broadcast %369 : f32 to vector<1x512xf32>
    %371 = arith.addf %368, %370 : vector<1x512xf32>
    %c40 = arith.constant 40 : index
    %372 = memref.load %arg1[%c40] : memref<99xf32, #tpu.memory_space<smem>>
    %373 = vector.broadcast %372 : f32 to vector<1x512xf32>
    %374 = arith.mulf %334, %373 : vector<1x512xf32>
    %375 = arith.addf %371, %374 : vector<1x512xf32>
    %c41 = arith.constant 41 : index
    %376 = memref.load %arg1[%c41] : memref<99xf32, #tpu.memory_space<smem>>
    %377 = vector.broadcast %376 : f32 to vector<1x512xf32>
    %378 = arith.mulf %349, %377 : vector<1x512xf32>
    %379 = arith.addf %375, %378 : vector<1x512xf32>
    %c42 = arith.constant 42 : index
    %380 = memref.load %arg1[%c42] : memref<99xf32, #tpu.memory_space<smem>>
    %381 = vector.broadcast %380 : f32 to vector<1x512xf32>
    %382 = arith.mulf %319, %381 : vector<1x512xf32>
    %c14_104 = arith.constant 14 : index
    %383 = memref.load %arg2[%c14_104] : memref<33xf32, #tpu.memory_space<smem>>
    %384 = vector.broadcast %383 : f32 to vector<1x512xf32>
    %385 = arith.addf %382, %384 : vector<1x512xf32>
    %c43 = arith.constant 43 : index
    %386 = memref.load %arg1[%c43] : memref<99xf32, #tpu.memory_space<smem>>
    %387 = vector.broadcast %386 : f32 to vector<1x512xf32>
    %388 = arith.mulf %334, %387 : vector<1x512xf32>
    %389 = arith.addf %385, %388 : vector<1x512xf32>
    %c44 = arith.constant 44 : index
    %390 = memref.load %arg1[%c44] : memref<99xf32, #tpu.memory_space<smem>>
    %391 = vector.broadcast %390 : f32 to vector<1x512xf32>
    %392 = arith.mulf %349, %391 : vector<1x512xf32>
    %393 = arith.addf %389, %392 : vector<1x512xf32>
    %c24_105 = arith.constant 24 : index
    %c0_106 = arith.constant 0 : index
    %394 = vector.load %arg5[%c24_105, %c0_106] : memref<60x512xf32, #tpu.memory_space<vmem>>, vector<1x512xf32>
    %cst_107 = arith.constant 2.000000e+00 : f32
    %395 = vector.broadcast %cst_107 : f32 to vector<1x512xf32>
    %396 = arith.addf %394, %395 : vector<1x512xf32>
    %397 = arith.negf %396 : vector<1x512xf32>
    %398 = math.exp %397 : vector<1x512xf32>
    %cst_108 = arith.constant 1.000000e+00 : f32
    %399 = vector.broadcast %cst_108 : f32 to vector<1x512xf32>
    %400 = arith.addf %399, %398 : vector<1x512xf32>
    %401 = arith.divf %399, %400 : vector<1x512xf32>
    %cst_109 = arith.constant 9.99999974E-5 : f32
    %402 = vector.broadcast %cst_109 : f32 to vector<1x512xf32>
    %403 = arith.addf %401, %402 : vector<1x512xf32>
    %404 = arith.mulf %365, %403 : vector<1x512xf32>
    %c27_110 = arith.constant 27 : index
    %c0_111 = arith.constant 0 : index
    %405 = vector.load %arg5[%c27_110, %c0_111] : memref<60x512xf32, #tpu.memory_space<vmem>>, vector<1x512xf32>
    %406 = arith.addf %404, %405 : vector<1x512xf32>
    %407 = math.log %403 : vector<1x512xf32>
    %408 = arith.addf %351, %407 : vector<1x512xf32>
    %c25_112 = arith.constant 25 : index
    %c0_113 = arith.constant 0 : index
    %409 = vector.load %arg5[%c25_112, %c0_113] : memref<60x512xf32, #tpu.memory_space<vmem>>, vector<1x512xf32>
    %cst_114 = arith.constant 2.000000e+00 : f32
    %410 = vector.broadcast %cst_114 : f32 to vector<1x512xf32>
    %411 = arith.addf %409, %410 : vector<1x512xf32>
    %412 = arith.negf %411 : vector<1x512xf32>
    %413 = math.exp %412 : vector<1x512xf32>
    %cst_115 = arith.constant 1.000000e+00 : f32
    %414 = vector.broadcast %cst_115 : f32 to vector<1x512xf32>
    %415 = arith.addf %414, %413 : vector<1x512xf32>
    %416 = arith.divf %414, %415 : vector<1x512xf32>
    %cst_116 = arith.constant 9.99999974E-5 : f32
    %417 = vector.broadcast %cst_116 : f32 to vector<1x512xf32>
    %418 = arith.addf %416, %417 : vector<1x512xf32>
    %419 = arith.mulf %379, %418 : vector<1x512xf32>
    %c28_117 = arith.constant 28 : index
    %c0_118 = arith.constant 0 : index
    %420 = vector.load %arg5[%c28_117, %c0_118] : memref<60x512xf32, #tpu.memory_space<vmem>>, vector<1x512xf32>
    %421 = arith.addf %419, %420 : vector<1x512xf32>
    %422 = math.log %418 : vector<1x512xf32>
    %423 = arith.addf %408, %422 : vector<1x512xf32>
    %c26_119 = arith.constant 26 : index
    %c0_120 = arith.constant 0 : index
    %424 = vector.load %arg5[%c26_119, %c0_120] : memref<60x512xf32, #tpu.memory_space<vmem>>, vector<1x512xf32>
    %cst_121 = arith.constant 2.000000e+00 : f32
    %425 = vector.broadcast %cst_121 : f32 to vector<1x512xf32>
    %426 = arith.addf %424, %425 : vector<1x512xf32>
    %427 = arith.negf %426 : vector<1x512xf32>
    %428 = math.exp %427 : vector<1x512xf32>
    %cst_122 = arith.constant 1.000000e+00 : f32
    %429 = vector.broadcast %cst_122 : f32 to vector<1x512xf32>
    %430 = arith.addf %429, %428 : vector<1x512xf32>
    %431 = arith.divf %429, %430 : vector<1x512xf32>
    %cst_123 = arith.constant 9.99999974E-5 : f32
    %432 = vector.broadcast %cst_123 : f32 to vector<1x512xf32>
    %433 = arith.addf %431, %432 : vector<1x512xf32>
    %434 = arith.mulf %393, %433 : vector<1x512xf32>
    %c29_124 = arith.constant 29 : index
    %c0_125 = arith.constant 0 : index
    %435 = vector.load %arg5[%c29_124, %c0_125] : memref<60x512xf32, #tpu.memory_space<vmem>>, vector<1x512xf32>
    %436 = arith.addf %434, %435 : vector<1x512xf32>
    %437 = math.log %433 : vector<1x512xf32>
    %438 = arith.addf %423, %437 : vector<1x512xf32>
    %c45 = arith.constant 45 : index
    %439 = memref.load %arg1[%c45] : memref<99xf32, #tpu.memory_space<smem>>
    %440 = vector.broadcast %439 : f32 to vector<1x512xf32>
    %441 = arith.mulf %406, %440 : vector<1x512xf32>
    %c15_126 = arith.constant 15 : index
    %442 = memref.load %arg2[%c15_126] : memref<33xf32, #tpu.memory_space<smem>>
    %443 = vector.broadcast %442 : f32 to vector<1x512xf32>
    %444 = arith.addf %441, %443 : vector<1x512xf32>
    %c46 = arith.constant 46 : index
    %445 = memref.load %arg1[%c46] : memref<99xf32, #tpu.memory_space<smem>>
    %446 = vector.broadcast %445 : f32 to vector<1x512xf32>
    %447 = arith.mulf %421, %446 : vector<1x512xf32>
    %448 = arith.addf %444, %447 : vector<1x512xf32>
    %c47 = arith.constant 47 : index
    %449 = memref.load %arg1[%c47] : memref<99xf32, #tpu.memory_space<smem>>
    %450 = vector.broadcast %449 : f32 to vector<1x512xf32>
    %451 = arith.mulf %436, %450 : vector<1x512xf32>
    %452 = arith.addf %448, %451 : vector<1x512xf32>
    %c48 = arith.constant 48 : index
    %453 = memref.load %arg1[%c48] : memref<99xf32, #tpu.memory_space<smem>>
    %454 = vector.broadcast %453 : f32 to vector<1x512xf32>
    %455 = arith.mulf %406, %454 : vector<1x512xf32>
    %c16_127 = arith.constant 16 : index
    %456 = memref.load %arg2[%c16_127] : memref<33xf32, #tpu.memory_space<smem>>
    %457 = vector.broadcast %456 : f32 to vector<1x512xf32>
    %458 = arith.addf %455, %457 : vector<1x512xf32>
    %c49 = arith.constant 49 : index
    %459 = memref.load %arg1[%c49] : memref<99xf32, #tpu.memory_space<smem>>
    %460 = vector.broadcast %459 : f32 to vector<1x512xf32>
    %461 = arith.mulf %421, %460 : vector<1x512xf32>
    %462 = arith.addf %458, %461 : vector<1x512xf32>
    %c50 = arith.constant 50 : index
    %463 = memref.load %arg1[%c50] : memref<99xf32, #tpu.memory_space<smem>>
    %464 = vector.broadcast %463 : f32 to vector<1x512xf32>
    %465 = arith.mulf %436, %464 : vector<1x512xf32>
    %466 = arith.addf %462, %465 : vector<1x512xf32>
    %c51 = arith.constant 51 : index
    %467 = memref.load %arg1[%c51] : memref<99xf32, #tpu.memory_space<smem>>
    %468 = vector.broadcast %467 : f32 to vector<1x512xf32>
    %469 = arith.mulf %406, %468 : vector<1x512xf32>
    %c17_128 = arith.constant 17 : index
    %470 = memref.load %arg2[%c17_128] : memref<33xf32, #tpu.memory_space<smem>>
    %471 = vector.broadcast %470 : f32 to vector<1x512xf32>
    %472 = arith.addf %469, %471 : vector<1x512xf32>
    %c52 = arith.constant 52 : index
    %473 = memref.load %arg1[%c52] : memref<99xf32, #tpu.memory_space<smem>>
    %474 = vector.broadcast %473 : f32 to vector<1x512xf32>
    %475 = arith.mulf %421, %474 : vector<1x512xf32>
    %476 = arith.addf %472, %475 : vector<1x512xf32>
    %c53 = arith.constant 53 : index
    %477 = memref.load %arg1[%c53] : memref<99xf32, #tpu.memory_space<smem>>
    %478 = vector.broadcast %477 : f32 to vector<1x512xf32>
    %479 = arith.mulf %436, %478 : vector<1x512xf32>
    %480 = arith.addf %476, %479 : vector<1x512xf32>
    %c30_129 = arith.constant 30 : index
    %c0_130 = arith.constant 0 : index
    %481 = vector.load %arg5[%c30_129, %c0_130] : memref<60x512xf32, #tpu.memory_space<vmem>>, vector<1x512xf32>
    %cst_131 = arith.constant 2.000000e+00 : f32
    %482 = vector.broadcast %cst_131 : f32 to vector<1x512xf32>
    %483 = arith.addf %481, %482 : vector<1x512xf32>
    %484 = arith.negf %483 : vector<1x512xf32>
    %485 = math.exp %484 : vector<1x512xf32>
    %cst_132 = arith.constant 1.000000e+00 : f32
    %486 = vector.broadcast %cst_132 : f32 to vector<1x512xf32>
    %487 = arith.addf %486, %485 : vector<1x512xf32>
    %488 = arith.divf %486, %487 : vector<1x512xf32>
    %cst_133 = arith.constant 9.99999974E-5 : f32
    %489 = vector.broadcast %cst_133 : f32 to vector<1x512xf32>
    %490 = arith.addf %488, %489 : vector<1x512xf32>
    %491 = arith.mulf %452, %490 : vector<1x512xf32>
    %c33_134 = arith.constant 33 : index
    %c0_135 = arith.constant 0 : index
    %492 = vector.load %arg5[%c33_134, %c0_135] : memref<60x512xf32, #tpu.memory_space<vmem>>, vector<1x512xf32>
    %493 = arith.addf %491, %492 : vector<1x512xf32>
    %494 = math.log %490 : vector<1x512xf32>
    %495 = arith.addf %438, %494 : vector<1x512xf32>
    %c31_136 = arith.constant 31 : index
    %c0_137 = arith.constant 0 : index
    %496 = vector.load %arg5[%c31_136, %c0_137] : memref<60x512xf32, #tpu.memory_space<vmem>>, vector<1x512xf32>
    %cst_138 = arith.constant 2.000000e+00 : f32
    %497 = vector.broadcast %cst_138 : f32 to vector<1x512xf32>
    %498 = arith.addf %496, %497 : vector<1x512xf32>
    %499 = arith.negf %498 : vector<1x512xf32>
    %500 = math.exp %499 : vector<1x512xf32>
    %cst_139 = arith.constant 1.000000e+00 : f32
    %501 = vector.broadcast %cst_139 : f32 to vector<1x512xf32>
    %502 = arith.addf %501, %500 : vector<1x512xf32>
    %503 = arith.divf %501, %502 : vector<1x512xf32>
    %cst_140 = arith.constant 9.99999974E-5 : f32
    %504 = vector.broadcast %cst_140 : f32 to vector<1x512xf32>
    %505 = arith.addf %503, %504 : vector<1x512xf32>
    %506 = arith.mulf %466, %505 : vector<1x512xf32>
    %c34_141 = arith.constant 34 : index
    %c0_142 = arith.constant 0 : index
    %507 = vector.load %arg5[%c34_141, %c0_142] : memref<60x512xf32, #tpu.memory_space<vmem>>, vector<1x512xf32>
    %508 = arith.addf %506, %507 : vector<1x512xf32>
    %509 = math.log %505 : vector<1x512xf32>
    %510 = arith.addf %495, %509 : vector<1x512xf32>
    %c32_143 = arith.constant 32 : index
    %c0_144 = arith.constant 0 : index
    %511 = vector.load %arg5[%c32_143, %c0_144] : memref<60x512xf32, #tpu.memory_space<vmem>>, vector<1x512xf32>
    %cst_145 = arith.constant 2.000000e+00 : f32
    %512 = vector.broadcast %cst_145 : f32 to vector<1x512xf32>
    %513 = arith.addf %511, %512 : vector<1x512xf32>
    %514 = arith.negf %513 : vector<1x512xf32>
    %515 = math.exp %514 : vector<1x512xf32>
    %cst_146 = arith.constant 1.000000e+00 : f32
    %516 = vector.broadcast %cst_146 : f32 to vector<1x512xf32>
    %517 = arith.addf %516, %515 : vector<1x512xf32>
    %518 = arith.divf %516, %517 : vector<1x512xf32>
    %cst_147 = arith.constant 9.99999974E-5 : f32
    %519 = vector.broadcast %cst_147 : f32 to vector<1x512xf32>
    %520 = arith.addf %518, %519 : vector<1x512xf32>
    %521 = arith.mulf %480, %520 : vector<1x512xf32>
    %c35_148 = arith.constant 35 : index
    %c0_149 = arith.constant 0 : index
    %522 = vector.load %arg5[%c35_148, %c0_149] : memref<60x512xf32, #tpu.memory_space<vmem>>, vector<1x512xf32>
    %523 = arith.addf %521, %522 : vector<1x512xf32>
    %524 = math.log %520 : vector<1x512xf32>
    %525 = arith.addf %510, %524 : vector<1x512xf32>
    %c54 = arith.constant 54 : index
    %526 = memref.load %arg1[%c54] : memref<99xf32, #tpu.memory_space<smem>>
    %527 = vector.broadcast %526 : f32 to vector<1x512xf32>
    %528 = arith.mulf %493, %527 : vector<1x512xf32>
    %c18_150 = arith.constant 18 : index
    %529 = memref.load %arg2[%c18_150] : memref<33xf32, #tpu.memory_space<smem>>
    %530 = vector.broadcast %529 : f32 to vector<1x512xf32>
    %531 = arith.addf %528, %530 : vector<1x512xf32>
    %c55 = arith.constant 55 : index
    %532 = memref.load %arg1[%c55] : memref<99xf32, #tpu.memory_space<smem>>
    %533 = vector.broadcast %532 : f32 to vector<1x512xf32>
    %534 = arith.mulf %508, %533 : vector<1x512xf32>
    %535 = arith.addf %531, %534 : vector<1x512xf32>
    %c56 = arith.constant 56 : index
    %536 = memref.load %arg1[%c56] : memref<99xf32, #tpu.memory_space<smem>>
    %537 = vector.broadcast %536 : f32 to vector<1x512xf32>
    %538 = arith.mulf %523, %537 : vector<1x512xf32>
    %539 = arith.addf %535, %538 : vector<1x512xf32>
    %c57 = arith.constant 57 : index
    %540 = memref.load %arg1[%c57] : memref<99xf32, #tpu.memory_space<smem>>
    %541 = vector.broadcast %540 : f32 to vector<1x512xf32>
    %542 = arith.mulf %493, %541 : vector<1x512xf32>
    %c19_151 = arith.constant 19 : index
    %543 = memref.load %arg2[%c19_151] : memref<33xf32, #tpu.memory_space<smem>>
    %544 = vector.broadcast %543 : f32 to vector<1x512xf32>
    %545 = arith.addf %542, %544 : vector<1x512xf32>
    %c58 = arith.constant 58 : index
    %546 = memref.load %arg1[%c58] : memref<99xf32, #tpu.memory_space<smem>>
    %547 = vector.broadcast %546 : f32 to vector<1x512xf32>
    %548 = arith.mulf %508, %547 : vector<1x512xf32>
    %549 = arith.addf %545, %548 : vector<1x512xf32>
    %c59 = arith.constant 59 : index
    %550 = memref.load %arg1[%c59] : memref<99xf32, #tpu.memory_space<smem>>
    %551 = vector.broadcast %550 : f32 to vector<1x512xf32>
    %552 = arith.mulf %523, %551 : vector<1x512xf32>
    %553 = arith.addf %549, %552 : vector<1x512xf32>
    %c60 = arith.constant 60 : index
    %554 = memref.load %arg1[%c60] : memref<99xf32, #tpu.memory_space<smem>>
    %555 = vector.broadcast %554 : f32 to vector<1x512xf32>
    %556 = arith.mulf %493, %555 : vector<1x512xf32>
    %c20_152 = arith.constant 20 : index
    %557 = memref.load %arg2[%c20_152] : memref<33xf32, #tpu.memory_space<smem>>
    %558 = vector.broadcast %557 : f32 to vector<1x512xf32>
    %559 = arith.addf %556, %558 : vector<1x512xf32>
    %c61 = arith.constant 61 : index
    %560 = memref.load %arg1[%c61] : memref<99xf32, #tpu.memory_space<smem>>
    %561 = vector.broadcast %560 : f32 to vector<1x512xf32>
    %562 = arith.mulf %508, %561 : vector<1x512xf32>
    %563 = arith.addf %559, %562 : vector<1x512xf32>
    %c62 = arith.constant 62 : index
    %564 = memref.load %arg1[%c62] : memref<99xf32, #tpu.memory_space<smem>>
    %565 = vector.broadcast %564 : f32 to vector<1x512xf32>
    %566 = arith.mulf %523, %565 : vector<1x512xf32>
    %567 = arith.addf %563, %566 : vector<1x512xf32>
    %c36_153 = arith.constant 36 : index
    %c0_154 = arith.constant 0 : index
    %568 = vector.load %arg5[%c36_153, %c0_154] : memref<60x512xf32, #tpu.memory_space<vmem>>, vector<1x512xf32>
    %cst_155 = arith.constant 2.000000e+00 : f32
    %569 = vector.broadcast %cst_155 : f32 to vector<1x512xf32>
    %570 = arith.addf %568, %569 : vector<1x512xf32>
    %571 = arith.negf %570 : vector<1x512xf32>
    %572 = math.exp %571 : vector<1x512xf32>
    %cst_156 = arith.constant 1.000000e+00 : f32
    %573 = vector.broadcast %cst_156 : f32 to vector<1x512xf32>
    %574 = arith.addf %573, %572 : vector<1x512xf32>
    %575 = arith.divf %573, %574 : vector<1x512xf32>
    %cst_157 = arith.constant 9.99999974E-5 : f32
    %576 = vector.broadcast %cst_157 : f32 to vector<1x512xf32>
    %577 = arith.addf %575, %576 : vector<1x512xf32>
    %578 = arith.mulf %539, %577 : vector<1x512xf32>
    %c39_158 = arith.constant 39 : index
    %c0_159 = arith.constant 0 : index
    %579 = vector.load %arg5[%c39_158, %c0_159] : memref<60x512xf32, #tpu.memory_space<vmem>>, vector<1x512xf32>
    %580 = arith.addf %578, %579 : vector<1x512xf32>
    %581 = math.log %577 : vector<1x512xf32>
    %582 = arith.addf %525, %581 : vector<1x512xf32>
    %c37_160 = arith.constant 37 : index
    %c0_161 = arith.constant 0 : index
    %583 = vector.load %arg5[%c37_160, %c0_161] : memref<60x512xf32, #tpu.memory_space<vmem>>, vector<1x512xf32>
    %cst_162 = arith.constant 2.000000e+00 : f32
    %584 = vector.broadcast %cst_162 : f32 to vector<1x512xf32>
    %585 = arith.addf %583, %584 : vector<1x512xf32>
    %586 = arith.negf %585 : vector<1x512xf32>
    %587 = math.exp %586 : vector<1x512xf32>
    %cst_163 = arith.constant 1.000000e+00 : f32
    %588 = vector.broadcast %cst_163 : f32 to vector<1x512xf32>
    %589 = arith.addf %588, %587 : vector<1x512xf32>
    %590 = arith.divf %588, %589 : vector<1x512xf32>
    %cst_164 = arith.constant 9.99999974E-5 : f32
    %591 = vector.broadcast %cst_164 : f32 to vector<1x512xf32>
    %592 = arith.addf %590, %591 : vector<1x512xf32>
    %593 = arith.mulf %553, %592 : vector<1x512xf32>
    %c40_165 = arith.constant 40 : index
    %c0_166 = arith.constant 0 : index
    %594 = vector.load %arg5[%c40_165, %c0_166] : memref<60x512xf32, #tpu.memory_space<vmem>>, vector<1x512xf32>
    %595 = arith.addf %593, %594 : vector<1x512xf32>
    %596 = math.log %592 : vector<1x512xf32>
    %597 = arith.addf %582, %596 : vector<1x512xf32>
    %c38_167 = arith.constant 38 : index
    %c0_168 = arith.constant 0 : index
    %598 = vector.load %arg5[%c38_167, %c0_168] : memref<60x512xf32, #tpu.memory_space<vmem>>, vector<1x512xf32>
    %cst_169 = arith.constant 2.000000e+00 : f32
    %599 = vector.broadcast %cst_169 : f32 to vector<1x512xf32>
    %600 = arith.addf %598, %599 : vector<1x512xf32>
    %601 = arith.negf %600 : vector<1x512xf32>
    %602 = math.exp %601 : vector<1x512xf32>
    %cst_170 = arith.constant 1.000000e+00 : f32
    %603 = vector.broadcast %cst_170 : f32 to vector<1x512xf32>
    %604 = arith.addf %603, %602 : vector<1x512xf32>
    %605 = arith.divf %603, %604 : vector<1x512xf32>
    %cst_171 = arith.constant 9.99999974E-5 : f32
    %606 = vector.broadcast %cst_171 : f32 to vector<1x512xf32>
    %607 = arith.addf %605, %606 : vector<1x512xf32>
    %608 = arith.mulf %567, %607 : vector<1x512xf32>
    %c41_172 = arith.constant 41 : index
    %c0_173 = arith.constant 0 : index
    %609 = vector.load %arg5[%c41_172, %c0_173] : memref<60x512xf32, #tpu.memory_space<vmem>>, vector<1x512xf32>
    %610 = arith.addf %608, %609 : vector<1x512xf32>
    %611 = math.log %607 : vector<1x512xf32>
    %612 = arith.addf %597, %611 : vector<1x512xf32>
    %c63 = arith.constant 63 : index
    %613 = memref.load %arg1[%c63] : memref<99xf32, #tpu.memory_space<smem>>
    %614 = vector.broadcast %613 : f32 to vector<1x512xf32>
    %615 = arith.mulf %580, %614 : vector<1x512xf32>
    %c21_174 = arith.constant 21 : index
    %616 = memref.load %arg2[%c21_174] : memref<33xf32, #tpu.memory_space<smem>>
    %617 = vector.broadcast %616 : f32 to vector<1x512xf32>
    %618 = arith.addf %615, %617 : vector<1x512xf32>
    %c64 = arith.constant 64 : index
    %619 = memref.load %arg1[%c64] : memref<99xf32, #tpu.memory_space<smem>>
    %620 = vector.broadcast %619 : f32 to vector<1x512xf32>
    %621 = arith.mulf %595, %620 : vector<1x512xf32>
    %622 = arith.addf %618, %621 : vector<1x512xf32>
    %c65 = arith.constant 65 : index
    %623 = memref.load %arg1[%c65] : memref<99xf32, #tpu.memory_space<smem>>
    %624 = vector.broadcast %623 : f32 to vector<1x512xf32>
    %625 = arith.mulf %610, %624 : vector<1x512xf32>
    %626 = arith.addf %622, %625 : vector<1x512xf32>
    %c66 = arith.constant 66 : index
    %627 = memref.load %arg1[%c66] : memref<99xf32, #tpu.memory_space<smem>>
    %628 = vector.broadcast %627 : f32 to vector<1x512xf32>
    %629 = arith.mulf %580, %628 : vector<1x512xf32>
    %c22_175 = arith.constant 22 : index
    %630 = memref.load %arg2[%c22_175] : memref<33xf32, #tpu.memory_space<smem>>
    %631 = vector.broadcast %630 : f32 to vector<1x512xf32>
    %632 = arith.addf %629, %631 : vector<1x512xf32>
    %c67 = arith.constant 67 : index
    %633 = memref.load %arg1[%c67] : memref<99xf32, #tpu.memory_space<smem>>
    %634 = vector.broadcast %633 : f32 to vector<1x512xf32>
    %635 = arith.mulf %595, %634 : vector<1x512xf32>
    %636 = arith.addf %632, %635 : vector<1x512xf32>
    %c68 = arith.constant 68 : index
    %637 = memref.load %arg1[%c68] : memref<99xf32, #tpu.memory_space<smem>>
    %638 = vector.broadcast %637 : f32 to vector<1x512xf32>
    %639 = arith.mulf %610, %638 : vector<1x512xf32>
    %640 = arith.addf %636, %639 : vector<1x512xf32>
    %c69 = arith.constant 69 : index
    %641 = memref.load %arg1[%c69] : memref<99xf32, #tpu.memory_space<smem>>
    %642 = vector.broadcast %641 : f32 to vector<1x512xf32>
    %643 = arith.mulf %580, %642 : vector<1x512xf32>
    %c23_176 = arith.constant 23 : index
    %644 = memref.load %arg2[%c23_176] : memref<33xf32, #tpu.memory_space<smem>>
    %645 = vector.broadcast %644 : f32 to vector<1x512xf32>
    %646 = arith.addf %643, %645 : vector<1x512xf32>
    %c70 = arith.constant 70 : index
    %647 = memref.load %arg1[%c70] : memref<99xf32, #tpu.memory_space<smem>>
    %648 = vector.broadcast %647 : f32 to vector<1x512xf32>
    %649 = arith.mulf %595, %648 : vector<1x512xf32>
    %650 = arith.addf %646, %649 : vector<1x512xf32>
    %c71 = arith.constant 71 : index
    %651 = memref.load %arg1[%c71] : memref<99xf32, #tpu.memory_space<smem>>
    %652 = vector.broadcast %651 : f32 to vector<1x512xf32>
    %653 = arith.mulf %610, %652 : vector<1x512xf32>
    %654 = arith.addf %650, %653 : vector<1x512xf32>
    %c42_177 = arith.constant 42 : index
    %c0_178 = arith.constant 0 : index
    %655 = vector.load %arg5[%c42_177, %c0_178] : memref<60x512xf32, #tpu.memory_space<vmem>>, vector<1x512xf32>
    %cst_179 = arith.constant 2.000000e+00 : f32
    %656 = vector.broadcast %cst_179 : f32 to vector<1x512xf32>
    %657 = arith.addf %655, %656 : vector<1x512xf32>
    %658 = arith.negf %657 : vector<1x512xf32>
    %659 = math.exp %658 : vector<1x512xf32>
    %cst_180 = arith.constant 1.000000e+00 : f32
    %660 = vector.broadcast %cst_180 : f32 to vector<1x512xf32>
    %661 = arith.addf %660, %659 : vector<1x512xf32>
    %662 = arith.divf %660, %661 : vector<1x512xf32>
    %cst_181 = arith.constant 9.99999974E-5 : f32
    %663 = vector.broadcast %cst_181 : f32 to vector<1x512xf32>
    %664 = arith.addf %662, %663 : vector<1x512xf32>
    %665 = arith.mulf %626, %664 : vector<1x512xf32>
    %c45_182 = arith.constant 45 : index
    %c0_183 = arith.constant 0 : index
    %666 = vector.load %arg5[%c45_182, %c0_183] : memref<60x512xf32, #tpu.memory_space<vmem>>, vector<1x512xf32>
    %667 = arith.addf %665, %666 : vector<1x512xf32>
    %668 = math.log %664 : vector<1x512xf32>
    %669 = arith.addf %612, %668 : vector<1x512xf32>
    %c43_184 = arith.constant 43 : index
    %c0_185 = arith.constant 0 : index
    %670 = vector.load %arg5[%c43_184, %c0_185] : memref<60x512xf32, #tpu.memory_space<vmem>>, vector<1x512xf32>
    %cst_186 = arith.constant 2.000000e+00 : f32
    %671 = vector.broadcast %cst_186 : f32 to vector<1x512xf32>
    %672 = arith.addf %670, %671 : vector<1x512xf32>
    %673 = arith.negf %672 : vector<1x512xf32>
    %674 = math.exp %673 : vector<1x512xf32>
    %cst_187 = arith.constant 1.000000e+00 : f32
    %675 = vector.broadcast %cst_187 : f32 to vector<1x512xf32>
    %676 = arith.addf %675, %674 : vector<1x512xf32>
    %677 = arith.divf %675, %676 : vector<1x512xf32>
    %cst_188 = arith.constant 9.99999974E-5 : f32
    %678 = vector.broadcast %cst_188 : f32 to vector<1x512xf32>
    %679 = arith.addf %677, %678 : vector<1x512xf32>
    %680 = arith.mulf %640, %679 : vector<1x512xf32>
    %c46_189 = arith.constant 46 : index
    %c0_190 = arith.constant 0 : index
    %681 = vector.load %arg5[%c46_189, %c0_190] : memref<60x512xf32, #tpu.memory_space<vmem>>, vector<1x512xf32>
    %682 = arith.addf %680, %681 : vector<1x512xf32>
    %683 = math.log %679 : vector<1x512xf32>
    %684 = arith.addf %669, %683 : vector<1x512xf32>
    %c44_191 = arith.constant 44 : index
    %c0_192 = arith.constant 0 : index
    %685 = vector.load %arg5[%c44_191, %c0_192] : memref<60x512xf32, #tpu.memory_space<vmem>>, vector<1x512xf32>
    %cst_193 = arith.constant 2.000000e+00 : f32
    %686 = vector.broadcast %cst_193 : f32 to vector<1x512xf32>
    %687 = arith.addf %685, %686 : vector<1x512xf32>
    %688 = arith.negf %687 : vector<1x512xf32>
    %689 = math.exp %688 : vector<1x512xf32>
    %cst_194 = arith.constant 1.000000e+00 : f32
    %690 = vector.broadcast %cst_194 : f32 to vector<1x512xf32>
    %691 = arith.addf %690, %689 : vector<1x512xf32>
    %692 = arith.divf %690, %691 : vector<1x512xf32>
    %cst_195 = arith.constant 9.99999974E-5 : f32
    %693 = vector.broadcast %cst_195 : f32 to vector<1x512xf32>
    %694 = arith.addf %692, %693 : vector<1x512xf32>
    %695 = arith.mulf %654, %694 : vector<1x512xf32>
    %c47_196 = arith.constant 47 : index
    %c0_197 = arith.constant 0 : index
    %696 = vector.load %arg5[%c47_196, %c0_197] : memref<60x512xf32, #tpu.memory_space<vmem>>, vector<1x512xf32>
    %697 = arith.addf %695, %696 : vector<1x512xf32>
    %698 = math.log %694 : vector<1x512xf32>
    %699 = arith.addf %684, %698 : vector<1x512xf32>
    %c72 = arith.constant 72 : index
    %700 = memref.load %arg1[%c72] : memref<99xf32, #tpu.memory_space<smem>>
    %701 = vector.broadcast %700 : f32 to vector<1x512xf32>
    %702 = arith.mulf %667, %701 : vector<1x512xf32>
    %c24_198 = arith.constant 24 : index
    %703 = memref.load %arg2[%c24_198] : memref<33xf32, #tpu.memory_space<smem>>
    %704 = vector.broadcast %703 : f32 to vector<1x512xf32>
    %705 = arith.addf %702, %704 : vector<1x512xf32>
    %c73 = arith.constant 73 : index
    %706 = memref.load %arg1[%c73] : memref<99xf32, #tpu.memory_space<smem>>
    %707 = vector.broadcast %706 : f32 to vector<1x512xf32>
    %708 = arith.mulf %682, %707 : vector<1x512xf32>
    %709 = arith.addf %705, %708 : vector<1x512xf32>
    %c74 = arith.constant 74 : index
    %710 = memref.load %arg1[%c74] : memref<99xf32, #tpu.memory_space<smem>>
    %711 = vector.broadcast %710 : f32 to vector<1x512xf32>
    %712 = arith.mulf %697, %711 : vector<1x512xf32>
    %713 = arith.addf %709, %712 : vector<1x512xf32>
    %c75 = arith.constant 75 : index
    %714 = memref.load %arg1[%c75] : memref<99xf32, #tpu.memory_space<smem>>
    %715 = vector.broadcast %714 : f32 to vector<1x512xf32>
    %716 = arith.mulf %667, %715 : vector<1x512xf32>
    %c25_199 = arith.constant 25 : index
    %717 = memref.load %arg2[%c25_199] : memref<33xf32, #tpu.memory_space<smem>>
    %718 = vector.broadcast %717 : f32 to vector<1x512xf32>
    %719 = arith.addf %716, %718 : vector<1x512xf32>
    %c76 = arith.constant 76 : index
    %720 = memref.load %arg1[%c76] : memref<99xf32, #tpu.memory_space<smem>>
    %721 = vector.broadcast %720 : f32 to vector<1x512xf32>
    %722 = arith.mulf %682, %721 : vector<1x512xf32>
    %723 = arith.addf %719, %722 : vector<1x512xf32>
    %c77 = arith.constant 77 : index
    %724 = memref.load %arg1[%c77] : memref<99xf32, #tpu.memory_space<smem>>
    %725 = vector.broadcast %724 : f32 to vector<1x512xf32>
    %726 = arith.mulf %697, %725 : vector<1x512xf32>
    %727 = arith.addf %723, %726 : vector<1x512xf32>
    %c78 = arith.constant 78 : index
    %728 = memref.load %arg1[%c78] : memref<99xf32, #tpu.memory_space<smem>>
    %729 = vector.broadcast %728 : f32 to vector<1x512xf32>
    %730 = arith.mulf %667, %729 : vector<1x512xf32>
    %c26_200 = arith.constant 26 : index
    %731 = memref.load %arg2[%c26_200] : memref<33xf32, #tpu.memory_space<smem>>
    %732 = vector.broadcast %731 : f32 to vector<1x512xf32>
    %733 = arith.addf %730, %732 : vector<1x512xf32>
    %c79 = arith.constant 79 : index
    %734 = memref.load %arg1[%c79] : memref<99xf32, #tpu.memory_space<smem>>
    %735 = vector.broadcast %734 : f32 to vector<1x512xf32>
    %736 = arith.mulf %682, %735 : vector<1x512xf32>
    %737 = arith.addf %733, %736 : vector<1x512xf32>
    %c80 = arith.constant 80 : index
    %738 = memref.load %arg1[%c80] : memref<99xf32, #tpu.memory_space<smem>>
    %739 = vector.broadcast %738 : f32 to vector<1x512xf32>
    %740 = arith.mulf %697, %739 : vector<1x512xf32>
    %741 = arith.addf %737, %740 : vector<1x512xf32>
    %c48_201 = arith.constant 48 : index
    %c0_202 = arith.constant 0 : index
    %742 = vector.load %arg5[%c48_201, %c0_202] : memref<60x512xf32, #tpu.memory_space<vmem>>, vector<1x512xf32>
    %cst_203 = arith.constant 2.000000e+00 : f32
    %743 = vector.broadcast %cst_203 : f32 to vector<1x512xf32>
    %744 = arith.addf %742, %743 : vector<1x512xf32>
    %745 = arith.negf %744 : vector<1x512xf32>
    %746 = math.exp %745 : vector<1x512xf32>
    %cst_204 = arith.constant 1.000000e+00 : f32
    %747 = vector.broadcast %cst_204 : f32 to vector<1x512xf32>
    %748 = arith.addf %747, %746 : vector<1x512xf32>
    %749 = arith.divf %747, %748 : vector<1x512xf32>
    %cst_205 = arith.constant 9.99999974E-5 : f32
    %750 = vector.broadcast %cst_205 : f32 to vector<1x512xf32>
    %751 = arith.addf %749, %750 : vector<1x512xf32>
    %752 = arith.mulf %713, %751 : vector<1x512xf32>
    %c51_206 = arith.constant 51 : index
    %c0_207 = arith.constant 0 : index
    %753 = vector.load %arg5[%c51_206, %c0_207] : memref<60x512xf32, #tpu.memory_space<vmem>>, vector<1x512xf32>
    %754 = arith.addf %752, %753 : vector<1x512xf32>
    %755 = math.log %751 : vector<1x512xf32>
    %756 = arith.addf %699, %755 : vector<1x512xf32>
    %c49_208 = arith.constant 49 : index
    %c0_209 = arith.constant 0 : index
    %757 = vector.load %arg5[%c49_208, %c0_209] : memref<60x512xf32, #tpu.memory_space<vmem>>, vector<1x512xf32>
    %cst_210 = arith.constant 2.000000e+00 : f32
    %758 = vector.broadcast %cst_210 : f32 to vector<1x512xf32>
    %759 = arith.addf %757, %758 : vector<1x512xf32>
    %760 = arith.negf %759 : vector<1x512xf32>
    %761 = math.exp %760 : vector<1x512xf32>
    %cst_211 = arith.constant 1.000000e+00 : f32
    %762 = vector.broadcast %cst_211 : f32 to vector<1x512xf32>
    %763 = arith.addf %762, %761 : vector<1x512xf32>
    %764 = arith.divf %762, %763 : vector<1x512xf32>
    %cst_212 = arith.constant 9.99999974E-5 : f32
    %765 = vector.broadcast %cst_212 : f32 to vector<1x512xf32>
    %766 = arith.addf %764, %765 : vector<1x512xf32>
    %767 = arith.mulf %727, %766 : vector<1x512xf32>
    %c52_213 = arith.constant 52 : index
    %c0_214 = arith.constant 0 : index
    %768 = vector.load %arg5[%c52_213, %c0_214] : memref<60x512xf32, #tpu.memory_space<vmem>>, vector<1x512xf32>
    %769 = arith.addf %767, %768 : vector<1x512xf32>
    %770 = math.log %766 : vector<1x512xf32>
    %771 = arith.addf %756, %770 : vector<1x512xf32>
    %c50_215 = arith.constant 50 : index
    %c0_216 = arith.constant 0 : index
    %772 = vector.load %arg5[%c50_215, %c0_216] : memref<60x512xf32, #tpu.memory_space<vmem>>, vector<1x512xf32>
    %cst_217 = arith.constant 2.000000e+00 : f32
    %773 = vector.broadcast %cst_217 : f32 to vector<1x512xf32>
    %774 = arith.addf %772, %773 : vector<1x512xf32>
    %775 = arith.negf %774 : vector<1x512xf32>
    %776 = math.exp %775 : vector<1x512xf32>
    %cst_218 = arith.constant 1.000000e+00 : f32
    %777 = vector.broadcast %cst_218 : f32 to vector<1x512xf32>
    %778 = arith.addf %777, %776 : vector<1x512xf32>
    %779 = arith.divf %777, %778 : vector<1x512xf32>
    %cst_219 = arith.constant 9.99999974E-5 : f32
    %780 = vector.broadcast %cst_219 : f32 to vector<1x512xf32>
    %781 = arith.addf %779, %780 : vector<1x512xf32>
    %782 = arith.mulf %741, %781 : vector<1x512xf32>
    %c53_220 = arith.constant 53 : index
    %c0_221 = arith.constant 0 : index
    %783 = vector.load %arg5[%c53_220, %c0_221] : memref<60x512xf32, #tpu.memory_space<vmem>>, vector<1x512xf32>
    %784 = arith.addf %782, %783 : vector<1x512xf32>
    %785 = math.log %781 : vector<1x512xf32>
    %786 = arith.addf %771, %785 : vector<1x512xf32>
    %c81 = arith.constant 81 : index
    %787 = memref.load %arg1[%c81] : memref<99xf32, #tpu.memory_space<smem>>
    %788 = vector.broadcast %787 : f32 to vector<1x512xf32>
    %789 = arith.mulf %754, %788 : vector<1x512xf32>
    %c27_222 = arith.constant 27 : index
    %790 = memref.load %arg2[%c27_222] : memref<33xf32, #tpu.memory_space<smem>>
    %791 = vector.broadcast %790 : f32 to vector<1x512xf32>
    %792 = arith.addf %789, %791 : vector<1x512xf32>
    %c82 = arith.constant 82 : index
    %793 = memref.load %arg1[%c82] : memref<99xf32, #tpu.memory_space<smem>>
    %794 = vector.broadcast %793 : f32 to vector<1x512xf32>
    %795 = arith.mulf %769, %794 : vector<1x512xf32>
    %796 = arith.addf %792, %795 : vector<1x512xf32>
    %c83 = arith.constant 83 : index
    %797 = memref.load %arg1[%c83] : memref<99xf32, #tpu.memory_space<smem>>
    %798 = vector.broadcast %797 : f32 to vector<1x512xf32>
    %799 = arith.mulf %784, %798 : vector<1x512xf32>
    %800 = arith.addf %796, %799 : vector<1x512xf32>
    %c84 = arith.constant 84 : index
    %801 = memref.load %arg1[%c84] : memref<99xf32, #tpu.memory_space<smem>>
    %802 = vector.broadcast %801 : f32 to vector<1x512xf32>
    %803 = arith.mulf %754, %802 : vector<1x512xf32>
    %c28_223 = arith.constant 28 : index
    %804 = memref.load %arg2[%c28_223] : memref<33xf32, #tpu.memory_space<smem>>
    %805 = vector.broadcast %804 : f32 to vector<1x512xf32>
    %806 = arith.addf %803, %805 : vector<1x512xf32>
    %c85 = arith.constant 85 : index
    %807 = memref.load %arg1[%c85] : memref<99xf32, #tpu.memory_space<smem>>
    %808 = vector.broadcast %807 : f32 to vector<1x512xf32>
    %809 = arith.mulf %769, %808 : vector<1x512xf32>
    %810 = arith.addf %806, %809 : vector<1x512xf32>
    %c86 = arith.constant 86 : index
    %811 = memref.load %arg1[%c86] : memref<99xf32, #tpu.memory_space<smem>>
    %812 = vector.broadcast %811 : f32 to vector<1x512xf32>
    %813 = arith.mulf %784, %812 : vector<1x512xf32>
    %814 = arith.addf %810, %813 : vector<1x512xf32>
    %c87 = arith.constant 87 : index
    %815 = memref.load %arg1[%c87] : memref<99xf32, #tpu.memory_space<smem>>
    %816 = vector.broadcast %815 : f32 to vector<1x512xf32>
    %817 = arith.mulf %754, %816 : vector<1x512xf32>
    %c29_224 = arith.constant 29 : index
    %818 = memref.load %arg2[%c29_224] : memref<33xf32, #tpu.memory_space<smem>>
    %819 = vector.broadcast %818 : f32 to vector<1x512xf32>
    %820 = arith.addf %817, %819 : vector<1x512xf32>
    %c88 = arith.constant 88 : index
    %821 = memref.load %arg1[%c88] : memref<99xf32, #tpu.memory_space<smem>>
    %822 = vector.broadcast %821 : f32 to vector<1x512xf32>
    %823 = arith.mulf %769, %822 : vector<1x512xf32>
    %824 = arith.addf %820, %823 : vector<1x512xf32>
    %c89 = arith.constant 89 : index
    %825 = memref.load %arg1[%c89] : memref<99xf32, #tpu.memory_space<smem>>
    %826 = vector.broadcast %825 : f32 to vector<1x512xf32>
    %827 = arith.mulf %784, %826 : vector<1x512xf32>
    %828 = arith.addf %824, %827 : vector<1x512xf32>
    %c54_225 = arith.constant 54 : index
    %c0_226 = arith.constant 0 : index
    %829 = vector.load %arg5[%c54_225, %c0_226] : memref<60x512xf32, #tpu.memory_space<vmem>>, vector<1x512xf32>
    %cst_227 = arith.constant 2.000000e+00 : f32
    %830 = vector.broadcast %cst_227 : f32 to vector<1x512xf32>
    %831 = arith.addf %829, %830 : vector<1x512xf32>
    %832 = arith.negf %831 : vector<1x512xf32>
    %833 = math.exp %832 : vector<1x512xf32>
    %cst_228 = arith.constant 1.000000e+00 : f32
    %834 = vector.broadcast %cst_228 : f32 to vector<1x512xf32>
    %835 = arith.addf %834, %833 : vector<1x512xf32>
    %836 = arith.divf %834, %835 : vector<1x512xf32>
    %cst_229 = arith.constant 9.99999974E-5 : f32
    %837 = vector.broadcast %cst_229 : f32 to vector<1x512xf32>
    %838 = arith.addf %836, %837 : vector<1x512xf32>
    %839 = arith.mulf %800, %838 : vector<1x512xf32>
    %c57_230 = arith.constant 57 : index
    %c0_231 = arith.constant 0 : index
    %840 = vector.load %arg5[%c57_230, %c0_231] : memref<60x512xf32, #tpu.memory_space<vmem>>, vector<1x512xf32>
    %841 = arith.addf %839, %840 : vector<1x512xf32>
    %842 = math.log %838 : vector<1x512xf32>
    %843 = arith.addf %786, %842 : vector<1x512xf32>
    %c55_232 = arith.constant 55 : index
    %c0_233 = arith.constant 0 : index
    %844 = vector.load %arg5[%c55_232, %c0_233] : memref<60x512xf32, #tpu.memory_space<vmem>>, vector<1x512xf32>
    %cst_234 = arith.constant 2.000000e+00 : f32
    %845 = vector.broadcast %cst_234 : f32 to vector<1x512xf32>
    %846 = arith.addf %844, %845 : vector<1x512xf32>
    %847 = arith.negf %846 : vector<1x512xf32>
    %848 = math.exp %847 : vector<1x512xf32>
    %cst_235 = arith.constant 1.000000e+00 : f32
    %849 = vector.broadcast %cst_235 : f32 to vector<1x512xf32>
    %850 = arith.addf %849, %848 : vector<1x512xf32>
    %851 = arith.divf %849, %850 : vector<1x512xf32>
    %cst_236 = arith.constant 9.99999974E-5 : f32
    %852 = vector.broadcast %cst_236 : f32 to vector<1x512xf32>
    %853 = arith.addf %851, %852 : vector<1x512xf32>
    %854 = arith.mulf %814, %853 : vector<1x512xf32>
    %c58_237 = arith.constant 58 : index
    %c0_238 = arith.constant 0 : index
    %855 = vector.load %arg5[%c58_237, %c0_238] : memref<60x512xf32, #tpu.memory_space<vmem>>, vector<1x512xf32>
    %856 = arith.addf %854, %855 : vector<1x512xf32>
    %857 = math.log %853 : vector<1x512xf32>
    %858 = arith.addf %843, %857 : vector<1x512xf32>
    %c56_239 = arith.constant 56 : index
    %c0_240 = arith.constant 0 : index
    %859 = vector.load %arg5[%c56_239, %c0_240] : memref<60x512xf32, #tpu.memory_space<vmem>>, vector<1x512xf32>
    %cst_241 = arith.constant 2.000000e+00 : f32
    %860 = vector.broadcast %cst_241 : f32 to vector<1x512xf32>
    %861 = arith.addf %859, %860 : vector<1x512xf32>
    %862 = arith.negf %861 : vector<1x512xf32>
    %863 = math.exp %862 : vector<1x512xf32>
    %cst_242 = arith.constant 1.000000e+00 : f32
    %864 = vector.broadcast %cst_242 : f32 to vector<1x512xf32>
    %865 = arith.addf %864, %863 : vector<1x512xf32>
    %866 = arith.divf %864, %865 : vector<1x512xf32>
    %cst_243 = arith.constant 9.99999974E-5 : f32
    %867 = vector.broadcast %cst_243 : f32 to vector<1x512xf32>
    %868 = arith.addf %866, %867 : vector<1x512xf32>
    %869 = arith.mulf %828, %868 : vector<1x512xf32>
    %c59_244 = arith.constant 59 : index
    %c0_245 = arith.constant 0 : index
    %870 = vector.load %arg5[%c59_244, %c0_245] : memref<60x512xf32, #tpu.memory_space<vmem>>, vector<1x512xf32>
    %871 = arith.addf %869, %870 : vector<1x512xf32>
    %872 = math.log %868 : vector<1x512xf32>
    %873 = arith.addf %858, %872 : vector<1x512xf32>
    %c90 = arith.constant 90 : index
    %874 = memref.load %arg1[%c90] : memref<99xf32, #tpu.memory_space<smem>>
    %875 = vector.broadcast %874 : f32 to vector<1x512xf32>
    %876 = arith.mulf %841, %875 : vector<1x512xf32>
    %c30_246 = arith.constant 30 : index
    %877 = memref.load %arg2[%c30_246] : memref<33xf32, #tpu.memory_space<smem>>
    %878 = vector.broadcast %877 : f32 to vector<1x512xf32>
    %879 = arith.addf %876, %878 : vector<1x512xf32>
    %c91 = arith.constant 91 : index
    %880 = memref.load %arg1[%c91] : memref<99xf32, #tpu.memory_space<smem>>
    %881 = vector.broadcast %880 : f32 to vector<1x512xf32>
    %882 = arith.mulf %856, %881 : vector<1x512xf32>
    %883 = arith.addf %879, %882 : vector<1x512xf32>
    %c92 = arith.constant 92 : index
    %884 = memref.load %arg1[%c92] : memref<99xf32, #tpu.memory_space<smem>>
    %885 = vector.broadcast %884 : f32 to vector<1x512xf32>
    %886 = arith.mulf %871, %885 : vector<1x512xf32>
    %887 = arith.addf %883, %886 : vector<1x512xf32>
    %c0_247 = arith.constant 0 : index
    %c0_248 = arith.constant 0 : index
    %888 = vector.load %arg6[%c0_247, %c0_248] : memref<3x512xf32, #tpu.memory_space<vmem>>, vector<1x512xf32>
    tpu.vector_store %arg6[%c0_247, %c0_248], %887 {strides = array<i32>} : memref<3x512xf32, #tpu.memory_space<vmem>>, vector<1x512xf32>,
    %889 = arith.mulf %887, %887 : vector<1x512xf32>
    %cst_249 = arith.constant 1.83787704 : f32
    %890 = vector.broadcast %cst_249 : f32 to vector<1x512xf32>
    %891 = arith.addf %889, %890 : vector<1x512xf32>
    %cst_250 = arith.constant 5.000000e-01 : f32
    %892 = vector.broadcast %cst_250 : f32 to vector<1x512xf32>
    %893 = arith.mulf %892, %891 : vector<1x512xf32>
    %894 = arith.subf %873, %893 : vector<1x512xf32>
    %c93 = arith.constant 93 : index
    %895 = memref.load %arg1[%c93] : memref<99xf32, #tpu.memory_space<smem>>
    %896 = vector.broadcast %895 : f32 to vector<1x512xf32>
    %897 = arith.mulf %841, %896 : vector<1x512xf32>
    %c31_251 = arith.constant 31 : index
    %898 = memref.load %arg2[%c31_251] : memref<33xf32, #tpu.memory_space<smem>>
    %899 = vector.broadcast %898 : f32 to vector<1x512xf32>
    %900 = arith.addf %897, %899 : vector<1x512xf32>
    %c94 = arith.constant 94 : index
    %901 = memref.load %arg1[%c94] : memref<99xf32, #tpu.memory_space<smem>>
    %902 = vector.broadcast %901 : f32 to vector<1x512xf32>
    %903 = arith.mulf %856, %902 : vector<1x512xf32>
    %904 = arith.addf %900, %903 : vector<1x512xf32>
    %c95 = arith.constant 95 : index
    %905 = memref.load %arg1[%c95] : memref<99xf32, #tpu.memory_space<smem>>
    %906 = vector.broadcast %905 : f32 to vector<1x512xf32>
    %907 = arith.mulf %871, %906 : vector<1x512xf32>
    %908 = arith.addf %904, %907 : vector<1x512xf32>
    %c1_252 = arith.constant 1 : index
    %c0_253 = arith.constant 0 : index
    %909 = vector.load %arg6[%c1_252, %c0_253] : memref<3x512xf32, #tpu.memory_space<vmem>>, vector<1x512xf32>
    tpu.vector_store %arg6[%c1_252, %c0_253], %908 {strides = array<i32>} : memref<3x512xf32, #tpu.memory_space<vmem>>, vector<1x512xf32>,
    %910 = arith.mulf %908, %908 : vector<1x512xf32>
    %cst_254 = arith.constant 1.83787704 : f32
    %911 = vector.broadcast %cst_254 : f32 to vector<1x512xf32>
    %912 = arith.addf %910, %911 : vector<1x512xf32>
    %cst_255 = arith.constant 5.000000e-01 : f32
    %913 = vector.broadcast %cst_255 : f32 to vector<1x512xf32>
    %914 = arith.mulf %913, %912 : vector<1x512xf32>
    %915 = arith.subf %894, %914 : vector<1x512xf32>
    %c96 = arith.constant 96 : index
    %916 = memref.load %arg1[%c96] : memref<99xf32, #tpu.memory_space<smem>>
    %917 = vector.broadcast %916 : f32 to vector<1x512xf32>
    %918 = arith.mulf %841, %917 : vector<1x512xf32>
    %c32_256 = arith.constant 32 : index
    %919 = memref.load %arg2[%c32_256] : memref<33xf32, #tpu.memory_space<smem>>
    %920 = vector.broadcast %919 : f32 to vector<1x512xf32>
    %921 = arith.addf %918, %920 : vector<1x512xf32>
    %c97 = arith.constant 97 : index
    %922 = memref.load %arg1[%c97] : memref<99xf32, #tpu.memory_space<smem>>
    %923 = vector.broadcast %922 : f32 to vector<1x512xf32>
    %924 = arith.mulf %856, %923 : vector<1x512xf32>
    %925 = arith.addf %921, %924 : vector<1x512xf32>
    %c98 = arith.constant 98 : index
    %926 = memref.load %arg1[%c98] : memref<99xf32, #tpu.memory_space<smem>>
    %927 = vector.broadcast %926 : f32 to vector<1x512xf32>
    %928 = arith.mulf %871, %927 : vector<1x512xf32>
    %929 = arith.addf %925, %928 : vector<1x512xf32>
    %c2_257 = arith.constant 2 : index
    %c0_258 = arith.constant 0 : index
    %930 = vector.load %arg6[%c2_257, %c0_258] : memref<3x512xf32, #tpu.memory_space<vmem>>, vector<1x512xf32>
    tpu.vector_store %arg6[%c2_257, %c0_258], %929 {strides = array<i32>} : memref<3x512xf32, #tpu.memory_space<vmem>>, vector<1x512xf32>,
    %931 = arith.mulf %929, %929 : vector<1x512xf32>
    %cst_259 = arith.constant 1.83787704 : f32
    %932 = vector.broadcast %cst_259 : f32 to vector<1x512xf32>
    %933 = arith.addf %931, %932 : vector<1x512xf32>
    %cst_260 = arith.constant 5.000000e-01 : f32
    %934 = vector.broadcast %cst_260 : f32 to vector<1x512xf32>
    %935 = arith.mulf %934, %933 : vector<1x512xf32>
    %936 = arith.subf %915, %935 : vector<1x512xf32>
    %c0_261 = arith.constant 0 : index
    %937 = memref.load %arg3[%c0_261] : memref<1xf32, #tpu.memory_space<smem>>
    %938 = vector.broadcast %937 : f32 to vector<1x512xf32>
    %939 = arith.addf %936, %938 : vector<1x512xf32>
    %c0_262 = arith.constant 0 : index
    %c0_263 = arith.constant 0 : index
    %940 = vector.load %arg7[%c0_262, %c0_263] : memref<1x512xf32, #tpu.memory_space<vmem>>, vector<1x512xf32>
    tpu.vector_store %arg7[%c0_262, %c0_263], %939 {strides = array<i32>} : memref<1x512xf32, #tpu.memory_space<vmem>>, vector<1x512xf32>,
    return
  }
  func.func @transform_0(%arg0: i32) -> i32 {
    %c0_i32 = arith.constant 0 : i32
    %c0_i32_0 = arith.constant 0 : i32
    return %c0_i32 : i32
  }
  func.func @transform_1(%arg0: i32) -> i32 {
    %c0_i32 = arith.constant 0 : i32
    %c0_i32_0 = arith.constant 0 : i32
    return %c0_i32 : i32
  }
  func.func @transform_2(%arg0: i32) -> i32 {
    %c0_i32 = arith.constant 0 : i32
    %c0_i32_0 = arith.constant 0 : i32
    return %c0_i32 : i32
  }
  func.func @transform_3(%arg0: i32) -> (i32, i32) {
    %c0_i32 = arith.constant 0 : i32
    %c0_i32_0 = arith.constant 0 : i32
    return %c0_i32, %arg0 : i32, i32
  }
  func.func @transform_4(%arg0: i32) -> (i32, i32) {
    %c0_i32 = arith.constant 0 : i32
    %c0_i32_0 = arith.constant 0 : i32
    return %c0_i32, %arg0 : i32, i32
  }
  func.func @transform_5(%arg0: i32) -> (i32, i32) {
    %c0_i32 = arith.constant 0 : i32
    %c0_i32_0 = arith.constant 0 : i32
    return %c0_i32, %arg0 : i32, i32
  }
  func.func @transform_6(%arg0: i32) -> (i32, i32) {
    %c0_i32 = arith.constant 0 : i32
    %c0_i32_0 = arith.constant 0 : i32
    return %c0_i32, %arg0 : i32, i32
  }
}

</mosaic_0001>

<llo_original>
// kernel: tpu_custom_call.1
$region0: #{tpu_custom_call.1}
  #allocation0 [shape = 'u32[]', space=smem, size = 0x4, offset = 0x4, fixed_abs, tag = 'smem constant byte address 0x4 - core index']
  #allocation1 [shape = 'u32[144,128]{1,0:T(1,128)}', space=vmem, size = 0x12000, scoped, tag = 'internal scratch']
  #allocation2 [shape = 'f32[1]{0:T(128)S(6)}', space=smem, size = 0x200, scoped, tag = 'scoped memory for tpu_custom_call.1']
  %s0 = inlined_call_operand.vmem [shape: f32[99], index: 0, kind: input, shape index: {}]
  %s1 = inlined_call_operand.vmem [shape: f32[33], index: 1, kind: input, shape index: {}]
  %s2 = inlined_call_operand.<no memory space> [shape: f32[1], index: 2, kind: input, shape index: {}]
  %s3 = inlined_call_operand.hbm [shape: f32[3,1024], index: 3, kind: input, shape index: {}]
  %s4 = inlined_call_operand.hbm [shape: f32[60,1024], index: 4, kind: input, shape index: {}]
  %s5 = inlined_call_operand.hbm [shape: f32[3,1024], index: 5, kind: output, shape index: {0}]
  %s6 = inlined_call_operand.hbm [shape: f32[1,1024], index: 6, kind: output, shape index: {1}]
  %7 = xla_tuple %s5, %s6
  %s8 = sld [smem:[#allocation0]]
  $region77: #{tpu_custom_call.1} parent=0
    _
  %s10 = ssub.s32 1, %s8
  %s11 = scalar_select 0, %s10, %s8
  %12 = sst [smem:[#allocation2]] %s2
  $region1: #{tpu_custom_call.1} parent=0
    #allocation3 [shape = 'u8[512]{0}', space=smem, size = 0x200, scoped, tag = 'input window, operand 0, single buffered']
    #allocation4 [shape = 's32[2]{0}', space=sflag, size = 0x8, scoped, tag = 'scoped memory for tpu_custom_call.1']
    #allocation5 [shape = 's32[2]{0}', space=sflag, size = 0x8, scoped, tag = 'scoped memory for tpu_custom_call.1']
    #allocation6 [shape = 's32[2]{0}', space=sflag, size = 0x8, scoped, tag = 'scoped memory for tpu_custom_call.1']
    #allocation7 [shape = 'u8[512]{0}', space=smem, size = 0x200, scoped, tag = 'input window, operand 1, single buffered']
    #allocation8 [shape = 's32[1]{0}', space=sflag, size = 0x4, scoped, tag = 'scoped memory for tpu_custom_call.1']
    #allocation9 [shape = 'u8[16384]{0}', space=vmem, size = 0x4000, scoped, tag = 'input window, operand 3']
    #allocation10 [shape = 'u8[262144]{0}', space=vmem, size = 0x40000, scoped, tag = 'input window, operand 4']
    #allocation11 [shape = 's32[2]{0}', space=sflag, size = 0x8, scoped, tag = 'scoped memory for tpu_custom_call.1']
    #allocation12 [shape = 'u8[16384]{0}', space=vmem, size = 0x4000, scoped, tag = 'output window, operand 0']
    #allocation13 [shape = 'u8[4096]{0}', space=vmem, size = 0x1000, scoped, tag = 'output window, operand 1']
    #allocation14 [shape = 's32[2]{0}', space=sflag, size = 0x8, scoped, tag = 'scoped memory for tpu_custom_call.1']
    %13 = vsyncpa [#allocation6], 0
    %14 = vsyncpa [#allocation8], 0
    %15 = vsyncpa [#allocation4], 0
    %s16 = scalar_lea.sflag [#allocation4], 1
    %17 = vsyncpa %s16, 0
    %18 = vsyncpa [#allocation11], 0
    %s19 = scalar_lea.sflag [#allocation11], 1
    %20 = vsyncpa %s19, 0
    %21 = vsyncpa [#allocation5], 0
    %s22 = scalar_lea.sflag [#allocation5], 1
    %23 = vsyncpa %s22, 0
    %24 = vsyncpa [#allocation14], 0
    %s25 = scalar_lea.sflag [#allocation14], 1
    %26 = vsyncpa %s25, 0
    loop: start=0, step=1, limit=4
    $region2: #{tpu_custom_call.1} parent=1 // loop_pre_header
      _
    $region3: #{tpu_custom_call.1} parent=1 // loop_header
      %s28 = sphi 0, %s32
      %p29 = scmp.ge.s32.totalorder %s28, 4
      %s36 = sphi 0, %s36
      %s38 = sphi 0, %s36
      %s39 = sphi 0, %s38
      %s53 = sphi 0, %s39
      %s57 = sphi 0, %s57
      %s59 = sphi 0, %s57
      %s60 = sphi 0, %s59
      %s74 = sphi 0, %s60
      %s78 = sphi 0, %s78
      %s80 = sphi 0, %s78
      %s81 = sphi 0, %s80
      %s95 = sphi 0, %s81
      %s101 = sphi 0, %s103
      %s104 = sphi 0, %s101
      %s105 = sphi 0, %s104
      %s121 = sphi 0, %s105
      %s127 = sphi 0, %s129
      %s130 = sphi 0, %s127
      %s131 = sphi 0, %s130
      %s147 = sphi 0, %s131
      %s153 = sphi 0, %s155
      %s156 = sphi 0, %s153
      %s157 = sphi 0, %s156
      %s173 = sphi 0, %s157
      %s179 = sphi 0, %s181
      %s182 = sphi 0, %s179
      %s183 = sphi 0, %s182
      %s199 = sphi 0, %s183
    $region4: #{tpu_custom_call.1} parent=1 // loop_header_branch
      %31 = sbr.rel (%p29) target = $region8
    $region5: #{tpu_custom_call.1} parent=1 // loop_body
      %s33 = ssub.s32 %s28, 1
      %s34 = ssub.s32 %s28, 2
      %s35 = sadd.s32 %s28, 1
      %s37 = sadd.s32 %s36, 1
      %p40 = scmp.eq.s32.totalorder %s28, 1
      %p41 = scmp.ne.s32.totalorder %s36, %s38
      %p42 = scmp.eq.s32.totalorder %s28, 0
      %p43 = por %p41, %p42
      %p44 = scmp.ne.s32.totalorder %s36, %s38
      %p45 = scmp.eq.s32.totalorder %s33, 1
      %p46 = por %p44, %p45
      %p47 = scmp.ne.s32.totalorder %s38, %s39
      %p48 = scmp.eq.s32.totalorder %s33, 0
      %p49 = por %p47, %p48
      %p50 = scmp.ne.s32.totalorder %s38, %s39
      %p51 = scmp.eq.s32.totalorder %s34, 1
      %p52 = por %p50, %p51
      %p54 = scmp.ne.s32.totalorder %s39, %s53
      %p55 = scmp.eq.s32.totalorder %s34, 0
      %p56 = por %p54, %p55
      %s58 = sadd.s32 %s57, 1
      %p61 = scmp.eq.s32.totalorder %s28, 1
      %p62 = scmp.ne.s32.totalorder %s57, %s59
      %p63 = scmp.eq.s32.totalorder %s28, 0
      %p64 = por %p62, %p63
      %p65 = scmp.ne.s32.totalorder %s57, %s59
      %p66 = scmp.eq.s32.totalorder %s33, 1
      %p67 = por %p65, %p66
      %p68 = scmp.ne.s32.totalorder %s59, %s60
      %p69 = scmp.eq.s32.totalorder %s33, 0
      %p70 = por %p68, %p69
      %p71 = scmp.ne.s32.totalorder %s59, %s60
      %p72 = scmp.eq.s32.totalorder %s34, 1
      %p73 = por %p71, %p72
      %p75 = scmp.ne.s32.totalorder %s60, %s74
      %p76 = scmp.eq.s32.totalorder %s34, 0
      %p77 = por %p75, %p76
      %s79 = sadd.s32 %s78, 1
      %p82 = scmp.eq.s32.totalorder %s28, 1
      %p83 = scmp.ne.s32.totalorder %s78, %s80
      %p84 = scmp.eq.s32.totalorder %s28, 0
      %p85 = por %p83, %p84
      %p86 = scmp.ne.s32.totalorder %s78, %s80
      %p87 = scmp.eq.s32.totalorder %s33, 1
      %p88 = por %p86, %p87
      %p89 = scmp.ne.s32.totalorder %s80, %s81
      %p90 = scmp.eq.s32.totalorder %s33, 0
      %p91 = por %p89, %p90
      %p92 = scmp.ne.s32.totalorder %s80, %s81
      %p93 = scmp.eq.s32.totalorder %s34, 1
      %p94 = por %p92, %p93
      %p96 = scmp.ne.s32.totalorder %s81, %s95
      %p97 = scmp.eq.s32.totalorder %s34, 0
      %p98 = por %p96, %p97
      %s99 = ssub.s32 %s28, %s35
      %p100 = scmp.eq.s32.totalorder %s99, 0
      %s102 = sadd.s32 %s101, 1
      %s103 = scalar_select %p100, %s101, %s102
      %p106 = pneg %p100
      %p107 = scmp.eq.s32.totalorder %s28, 1
      %p108 = por %p106, %p107
      %p109 = scmp.ne.s32.totalorder %s101, %s104
      %p110 = scmp.eq.s32.totalorder %s28, 0
      %p111 = por %p109, %p110
      %p112 = scmp.ne.s32.totalorder %s101, %s104
      %p113 = scmp.eq.s32.totalorder %s33, 1
      %p114 = por %p112, %p113
      %p115 = scmp.ne.s32.totalorder %s104, %s105
      %p116 = scmp.eq.s32.totalorder %s33, 0
      %p117 = por %p115, %p116
      %p118 = scmp.ne.s32.totalorder %s104, %s105
      %p119 = scmp.eq.s32.totalorder %s34, 1
      %p120 = por %p118, %p119
      %p122 = scmp.ne.s32.totalorder %s105, %s121
      %p123 = scmp.eq.s32.totalorder %s34, 0
      %p124 = por %p122, %p123
      %s125 = ssub.s32 %s28, %s35
      %p126 = scmp.eq.s32.totalorder %s125, 0
      %s128 = sadd.s32 %s127, 1
      %s129 = scalar_select %p126, %s127, %s128
      %p132 = pneg %p126
      %p133 = scmp.eq.s32.totalorder %s28, 1
      %p134 = por %p132, %p133
      %p135 = scmp.ne.s32.totalorder %s127, %s130
      %p136 = scmp.eq.s32.totalorder %s28, 0
      %p137 = por %p135, %p136
      %p138 = scmp.ne.s32.totalorder %s127, %s130
      %p139 = scmp.eq.s32.totalorder %s33, 1
      %p140 = por %p138, %p139
      %p141 = scmp.ne.s32.totalorder %s130, %s131
      %p142 = scmp.eq.s32.totalorder %s33, 0
      %p143 = por %p141, %p142
      %p144 = scmp.ne.s32.totalorder %s130, %s131
      %p145 = scmp.eq.s32.totalorder %s34, 1
      %p146 = por %p144, %p145
      %p148 = scmp.ne.s32.totalorder %s131, %s147
      %p149 = scmp.eq.s32.totalorder %s34, 0
      %p150 = por %p148, %p149
      %s151 = ssub.s32 %s28, %s35
      %p152 = scmp.eq.s32.totalorder %s151, 0
      %s154 = sadd.s32 %s153, 1
      %s155 = scalar_select %p152, %s153, %s154
      %p158 = pneg %p152
      %p159 = scmp.eq.s32.totalorder %s28, 1
      %p160 = por %p158, %p159
      %p161 = scmp.ne.s32.totalorder %s153, %s156
      %p162 = scmp.eq.s32.totalorder %s28, 0
      %p163 = por %p161, %p162
      %p164 = scmp.ne.s32.totalorder %s153, %s156
      %p165 = scmp.eq.s32.totalorder %s33, 1
      %p166 = por %p164, %p165
      %p167 = scmp.ne.s32.totalorder %s156, %s157
      %p168 = scmp.eq.s32.totalorder %s33, 0
      %p169 = por %p167, %p168
      %p170 = scmp.ne.s32.totalorder %s156, %s157
      %p171 = scmp.eq.s32.totalorder %s34, 1
      %p172 = por %p170, %p171
      %p174 = scmp.ne.s32.totalorder %s157, %s173
      %p175 = scmp.eq.s32.totalorder %s34, 0
      %p176 = por %p174, %p175
      %s177 = ssub.s32 %s28, %s35
      %p178 = scmp.eq.s32.totalorder %s177, 0
      %s180 = sadd.s32 %s179, 1
      %s181 = scalar_select %p178, %s179, %s180
      %p184 = pneg %p178
      %p185 = scmp.eq.s32.totalorder %s28, 1
      %p186 = por %p184, %p185
      %p187 = scmp.ne.s32.totalorder %s179, %s182
      %p188 = scmp.eq.s32.totalorder %s28, 0
      %p189 = por %p187, %p188
      %p190 = scmp.ne.s32.totalorder %s179, %s182
      %p191 = scmp.eq.s32.totalorder %s33, 1
      %p192 = por %p190, %p191
      %p193 = scmp.ne.s32.totalorder %s182, %s183
      %p194 = scmp.eq.s32.totalorder %s33, 0
      %p195 = por %p193, %p194
      %p196 = scmp.ne.s32.totalorder %s182, %s183
      %p197 = scmp.eq.s32.totalorder %s34, 1
      %p198 = por %p196, %p197
      %p200 = scmp.ne.s32.totalorder %s183, %s199
      %p201 = scmp.eq.s32.totalorder %s34, 0
      %p202 = por %p200, %p201
      %p203 = scmp.le.s32.totalorder 1, %s28
      %p204 = scmp.lt.s32.totalorder %s28, 3
      %p205 = pnand %p203, %p204
      %p206 = pneg %p205
      // Predicated region
      $region9: #{tpu_custom_call.1} parent=5 // pred_check
        _
      $region10: #{tpu_custom_call.1} parent=5 // pred_check_branch
        %208 = sbr.rel (%p205) target = $region12
      $region11: #{tpu_custom_call.1} parent=5 // pred_region
        %s209 = ssub.s32 %s28, 1
        // Predicated region
        $region13: #{tpu_custom_call.1} parent=11 // pred_check
          %p210 = pneg %p49
        $region14: #{tpu_custom_call.1} parent=11 // pred_check_branch
          %212 = sbr.rel (%p210) target = $region16
        $region15: #{tpu_custom_call.1} parent=11 // pred_region
          %s214 = ssub.s32 16, 16
          %215 = vsyncadd [#allocation6], %s214
          %s217 = sshll.u32 %s0, 4
          %s218 = int_to_ptr.vmem [resolvable:$true] %s217
          %220 = dma.vmem_to_smem %s218, 16, [#allocation3], [#allocation6]
        $region16: #{tpu_custom_call.1} parent=11 // pred_fallthru
          _
        // Predicated region
        $region17: #{tpu_custom_call.1} parent=11 // pred_check
          %p221 = pneg %p70
        $region18: #{tpu_custom_call.1} parent=11 // pred_check_branch
          %223 = sbr.rel (%p221) target = $region20
        $region19: #{tpu_custom_call.1} parent=11 // pred_region
          %s225 = ssub.s32 16, 16
          %226 = vsyncadd [#allocation8], %s225
          %s228 = sshll.u32 %s1, 4
          %s229 = int_to_ptr.vmem [resolvable:$true] %s228
          %231 = dma.vmem_to_smem %s229, 16, [#allocation7], [#allocation8]
        $region20: #{tpu_custom_call.1} parent=11 // pred_fallthru
          _
        // Predicated region
        $region21: #{tpu_custom_call.1} parent=11 // pred_check
          %p232 = pneg %p91
        $region22: #{tpu_custom_call.1} parent=11 // pred_check_branch
          %234 = sbr.rel (%p232) target = $region24
        $region23: #{tpu_custom_call.1} parent=11 // pred_region
          _
        $region24: #{tpu_custom_call.1} parent=11 // pred_fallthru
          _
      $region12: #{tpu_custom_call.1} parent=5 // pred_fallthru
        _
      %p235 = scmp.lt.s32.totalorder %s28, 2
      // Predicated region
      $region25: #{tpu_custom_call.1} parent=5 // pred_check
        %p236 = pneg %p235
      $region26: #{tpu_custom_call.1} parent=5 // pred_check_branch
        %238 = sbr.rel (%p236) target = $region28
      $region27: #{tpu_custom_call.1} parent=5 // pred_region
        // Predicated region
        $region29: #{tpu_custom_call.1} parent=27 // pred_check
          %p239 = pneg %p111
        $region30: #{tpu_custom_call.1} parent=27 // pred_check_branch
          %241 = sbr.rel (%p239) target = $region32
        $region31: #{tpu_custom_call.1} parent=27 // pred_region
          %s242 = sand.u32 %s101, 1
          %s243 = scalar_lea.sflag [#allocation4], %s242
          %s244 = sand.u32 %s101, 1
          %s245 = smul.addr %s244, 16
          %s246 = scalar_lea.vmem [#allocation9], %s245
          %s247 = smul.u32 4, %s28
          %s249 = ssub.s32 256, 256
          %250 = vsyncadd %s243, %s249
          %s251 = smul.addr %s247, 64
          %s252 = scalar_lea.hbm %s3, %s251
          %s254 = sshll.u32 %s246, 4
          %s255 = int_to_ptr.vmem [resolvable:$true] %s254
          %257 = dma.hbm_to_vmem [thread:$0]  %s252, 256, %s255, %s243
        $region32: #{tpu_custom_call.1} parent=27 // pred_fallthru
          _
        // Predicated region
        $region33: #{tpu_custom_call.1} parent=27 // pred_check
          %p258 = pneg %p137
        $region34: #{tpu_custom_call.1} parent=27 // pred_check_branch
          %260 = sbr.rel (%p258) target = $region36
        $region35: #{tpu_custom_call.1} parent=27 // pred_region
          %s261 = sand.u32 %s127, 1
          %s262 = scalar_lea.sflag [#allocation11], %s261
          %s263 = sand.u32 %s127, 1
          %s264 = smul.addr %s263, 256
          %s265 = scalar_lea.vmem [#allocation10], %s264
          %s266 = smul.u32 4, %s28
          %s268 = ssub.s32 4096, 4096
          %269 = vsyncadd %s262, %s268
          %s270 = smul.addr %s266, 128
          %s271 = scalar_lea.hbm %s4, %s270
          %s272 = sshll.u32 %s265, 4
          %s273 = int_to_ptr.vmem [resolvable:$true] %s272
          %278 = dma.hbm_to_vmem [thread:$0]  %s271, 4096, %s273, %s262, 1024, 512, 32
        $region36: #{tpu_custom_call.1} parent=27 // pred_fallthru
          _
      $region28: #{tpu_custom_call.1} parent=5 // pred_fallthru
        _
      %p279 = scmp.le.s32.totalorder 1, %s28
      %p280 = scmp.lt.s32.totalorder %s28, 3
      %p281 = pnand %p279, %p280
      %p282 = pneg %p281
      // Predicated region
      $region37: #{tpu_custom_call.1} parent=5 // pred_check
        _
      $region38: #{tpu_custom_call.1} parent=5 // pred_check_branch
        %284 = sbr.rel (%p281) target = $region40
      $region39: #{tpu_custom_call.1} parent=5 // pred_region
        %s285 = ssub.s32 %s28, 1
        // Predicated region
        $region41: #{tpu_custom_call.1} parent=39 // pred_check
          %p286 = pneg %p49
        $region42: #{tpu_custom_call.1} parent=39 // pred_check_branch
          %288 = sbr.rel (%p286) target = $region44
        $region43: #{tpu_custom_call.1} parent=39 // pred_region
          %289 = dma.done [#allocation6], 16
        $region44: #{tpu_custom_call.1} parent=39 // pred_fallthru
          _
        // Predicated region
        $region45: #{tpu_custom_call.1} parent=39 // pred_check
          %p290 = pneg %p70
        $region46: #{tpu_custom_call.1} parent=39 // pred_check_branch
          %292 = sbr.rel (%p290) target = $region48
        $region47: #{tpu_custom_call.1} parent=39 // pred_region
          %293 = dma.done [#allocation8], 16
        $region48: #{tpu_custom_call.1} parent=39 // pred_fallthru
          _
        %s294 = sand.u32 %s104, 1
        %s295 = scalar_lea.sflag [#allocation4], %s294
        %s296 = sand.u32 %s104, 1
        %s297 = smul.addr %s296, 16
        %s298 = scalar_lea.vmem [#allocation9], %s297
        // Predicated region
        $region49: #{tpu_custom_call.1} parent=39 // pred_check
          %p299 = pneg %p117
        $region50: #{tpu_custom_call.1} parent=39 // pred_check_branch
          %301 = sbr.rel (%p299) target = $region52
        $region51: #{tpu_custom_call.1} parent=39 // pred_region
          %302 = dma.done %s295, 256
        $region52: #{tpu_custom_call.1} parent=39 // pred_fallthru
          _
        %s303 = sand.u32 %s130, 1
        %s304 = scalar_lea.sflag [#allocation11], %s303
        %s305 = sand.u32 %s130, 1
        %s306 = smul.addr %s305, 256
        %s307 = scalar_lea.vmem [#allocation10], %s306
        // Predicated region
        $region53: #{tpu_custom_call.1} parent=39 // pred_check
          %p308 = pneg %p143
        $region54: #{tpu_custom_call.1} parent=39 // pred_check_branch
          %310 = sbr.rel (%p308) target = $region56
        $region55: #{tpu_custom_call.1} parent=39 // pred_region
          %311 = dma.done %s304, 4096
        $region56: #{tpu_custom_call.1} parent=39 // pred_fallthru
          _
        %312 = sfence
        %p313 = pneg %p49
        %p314 = pneg %p46
        %p315 = pneg %p70
        %p316 = pneg %p67
        %p317 = pneg %p91
        %p318 = pneg %p88
        %s319 = sand.u32 %s104, 1
        %s320 = scalar_lea.sflag [#allocation4], %s319
        %s321 = sand.u32 %s104, 1
        %s322 = smul.addr %s321, 16
        %s323 = scalar_lea.vmem [#allocation9], %s322
        %p324 = pneg %p117
        %p325 = pneg %p114
        %s326 = sand.u32 %s130, 1
        %s327 = scalar_lea.sflag [#allocation11], %s326
        %s328 = sand.u32 %s130, 1
        %s329 = smul.addr %s328, 256
        %s330 = scalar_lea.vmem [#allocation10], %s329
        %p331 = pneg %p143
        %p332 = pneg %p140
        %p333 = pneg %p169
        %p334 = pneg %p166
        %s335 = sand.u32 %s156, 1
        %s336 = scalar_lea.sflag [#allocation5], %s335
        %s337 = sand.u32 %s156, 1
        %s338 = smul.addr %s337, 16
        %s339 = scalar_lea.vmem [#allocation12], %s338
        %p340 = pneg %p195
        %p341 = pneg %p192
        %s342 = sand.u32 %s182, 1
        %s343 = scalar_lea.sflag [#allocation14], %s342
        %s344 = sand.u32 %s182, 1
        %s345 = smul.addr %s344, 4
        %s346 = scalar_lea.vmem [#allocation13], %s345
        %s347 = smul.u32 4, %s33
        %s348 = smul.u32 4, %s33
        %s349 = smul.u32 4, %s33
        %s350 = smul.u32 4, %s33
        %v351 = vld [vmem:[%s298] ss:$4 sm:$0xf]
        %s352 = scalar_lea.vmem %s298, 1 [#allocation9]
        %v353 = vld [vmem:[%s352] ss:$4 sm:$0xf]
        %s354 = scalar_lea.vmem %s298, 2 [#allocation9]
        %v355 = vld [vmem:[%s354] ss:$4 sm:$0xf]
        %s356 = sld [smem:[#allocation3]]
        %v357 = vstv %s356
        %v358 = vmul.f32 %v351, %v357
        %s359 = sld [smem:[#allocation7]]
        %v360 = vstv %s359
        %v361 = vadd.f32 %v358, %v360
        %s362 = sld [smem:[#allocation3 + $0x1]]
        %v363 = vstv %s362
        %v364 = vmul.f32 %v353, %v363
        %v365 = vadd.f32 %v361, %v364
        %s366 = sld [smem:[#allocation3 + $0x2]]
        %v367 = vstv %s366
        %v368 = vmul.f32 %v355, %v367
        %v369 = vadd.f32 %v365, %v368
        %s370 = sld [smem:[#allocation3 + $0x3]]
        %v371 = vstv %s370
        %v372 = vmul.f32 %v351, %v371
        %s373 = sld [smem:[#allocation7 + $0x1]]
        %v374 = vstv %s373
        %v375 = vadd.f32 %v372, %v374
        %s376 = sld [smem:[#allocation3 + $0x4]]
        %v377 = vstv %s376
        %v378 = vmul.f32 %v353, %v377
        %v379 = vadd.f32 %v375, %v378
        %s380 = sld [smem:[#allocation3 + $0x5]]
        %v381 = vstv %s380
        %v382 = vmul.f32 %v355, %v381
        %v383 = vadd.f32 %v379, %v382
        %s384 = sld [smem:[#allocation3 + $0x6]]
        %v385 = vstv %s384
        %v386 = vmul.f32 %v351, %v385
        %s387 = sld [smem:[#allocation7 + $0x2]]
        %v388 = vstv %s387
        %v389 = vadd.f32 %v386, %v388
        %s390 = sld [smem:[#allocation3 + $0x7]]
        %v391 = vstv %s390
        %v392 = vmul.f32 %v353, %v391
        %v393 = vadd.f32 %v389, %v392
        %s394 = sld [smem:[#allocation3 + $0x8]]
        %v395 = vstv %s394
        %v396 = vmul.f32 %v355, %v395
        %v397 = vadd.f32 %v393, %v396
        %v398 = vld [vmem:[%s307] ss:$8 sm:$0xf]
        %v399 = vadd.f32 %v398, 2.0
        %v400 = vxor.u32 %v399, 2147483648
        %v401 = vmul.f32 %v400, 1.442695
        %v402 = vpow.pop %v401
        %v403 = vadd.f32 %v402, 1.0
        %v404 = vrcp.pop %v403
        %v405 = vmul.f32 1.0, %v404
        %v406 = vadd.f32 %v405, 0.0001
        %v407 = vmul.f32 %v369, %v406
        %s408 = scalar_lea.vmem %s307, 3 [#allocation10]
        %v409 = vld [vmem:[%s408] ss:$8 sm:$0xf]
        %v410 = vadd.f32 %v407, %v409
        %v411 = vlog2.pop %v406
        %v412 = vmul.f32 %v411, 0.6931472
        %v413 = vadd.f32 %v412, 0.0
        %s414 = scalar_lea.vmem %s307, 1 [#allocation10]
        %v415 = vld [vmem:[%s414] ss:$8 sm:$0xf]
        %v416 = vadd.f32 %v415, 2.0
        %v417 = vxor.u32 %v416, 2147483648
        %v418 = vmul.f32 %v417, 1.442695
        %v419 = vpow.pop %v418
        %v420 = vadd.f32 %v419, 1.0
        %v421 = vrcp.pop %v420
        %v422 = vmul.f32 1.0, %v421
        %v423 = vadd.f32 %v422, 0.0001
        %v424 = vmul.f32 %v383, %v423
        %s425 = scalar_lea.vmem %s307, 4 [#allocation10]
        %v426 = vld [vmem:[%s425] ss:$8 sm:$0xf]
        %v427 = vadd.f32 %v424, %v426
        %v428 = vlog2.pop %v423
        %v429 = vmul.f32 %v428, 0.6931472
        %v430 = vadd.f32 %v413, %v429
        %s431 = scalar_lea.vmem %s307, 2 [#allocation10]
        %v432 = vld [vmem:[%s431] ss:$8 sm:$0xf]
        %v433 = vadd.f32 %v432, 2.0
        %v434 = vxor.u32 %v433, 2147483648
        %v435 = vmul.f32 %v434, 1.442695
        %v436 = vpow.pop %v435
        %v437 = vadd.f32 %v436, 1.0
        %v438 = vrcp.pop %v437
        %v439 = vmul.f32 1.0, %v438
        %v440 = vadd.f32 %v439, 0.0001
        %v441 = vmul.f32 %v397, %v440
        %s442 = scalar_lea.vmem %s307, 5 [#allocation10]
        %v443 = vld [vmem:[%s442] ss:$8 sm:$0xf]
        %v444 = vadd.f32 %v441, %v443
        %v445 = vlog2.pop %v440
        %v446 = vmul.f32 %v445, 0.6931472
        %v447 = vadd.f32 %v430, %v446
        %s448 = sld [smem:[#allocation3 + $0x9]]
        %v449 = vstv %s448
        %v450 = vmul.f32 %v410, %v449
        %s451 = sld [smem:[#allocation7 + $0x3]]
        %v452 = vstv %s451
        %v453 = vadd.f32 %v450, %v452
        %s454 = sld [smem:[#allocation3 + $0xa]]
        %v455 = vstv %s454
        %v456 = vmul.f32 %v427, %v455
        %v457 = vadd.f32 %v453, %v456
        %s458 = sld [smem:[#allocation3 + $0xb]]
        %v459 = vstv %s458
        %v460 = vmul.f32 %v444, %v459
        %v461 = vadd.f32 %v457, %v460
        %s462 = sld [smem:[#allocation3 + $0xc]]
        %v463 = vstv %s462
        %v464 = vmul.f32 %v410, %v463
        %s465 = sld [smem:[#allocation7 + $0x4]]
        %v466 = vstv %s465
        %v467 = vadd.f32 %v464, %v466
        %s468 = sld [smem:[#allocation3 + $0xd]]
        %v469 = vstv %s468
        %v470 = vmul.f32 %v427, %v469
        %v471 = vadd.f32 %v467, %v470
        %s472 = sld [smem:[#allocation3 + $0xe]]
        %v473 = vstv %s472
        %v474 = vmul.f32 %v444, %v473
        %v475 = vadd.f32 %v471, %v474
        %s476 = sld [smem:[#allocation3 + $0xf]]
        %v477 = vstv %s476
        %v478 = vmul.f32 %v410, %v477
        %s479 = sld [smem:[#allocation7 + $0x5]]
        %v480 = vstv %s479
        %v481 = vadd.f32 %v478, %v480
        %s482 = sld [smem:[#allocation3 + $0x10]]
        %v483 = vstv %s482
        %v484 = vmul.f32 %v427, %v483
        %v485 = vadd.f32 %v481, %v484
        %s486 = sld [smem:[#allocation3 + $0x11]]
        %v487 = vstv %s486
        %v488 = vmul.f32 %v444, %v487
        %v489 = vadd.f32 %v485, %v488
        %s490 = scalar_lea.vmem %s307, 6 [#allocation10]
        %v491 = vld [vmem:[%s490] ss:$8 sm:$0xf]
        %v492 = vadd.f32 %v491, 2.0
        %v493 = vxor.u32 %v492, 2147483648
        %v494 = vmul.f32 %v493, 1.442695
        %v495 = vpow.pop %v494
        %v496 = vadd.f32 %v495, 1.0
        %v497 = vrcp.pop %v496
        %v498 = vmul.f32 1.0, %v497
        %v499 = vadd.f32 %v498, 0.0001
        %v500 = vmul.f32 %v461, %v499
        %s501 = scalar_lea.vmem %s307, 33 [#allocation10]
        %v502 = vld [vmem:[%s501] ss:$8 sm:$0xf]
        %v503 = vadd.f32 %v500, %v502
        %v504 = vlog2.pop %v499
        %v505 = vmul.f32 %v504, 0.6931472
        %v506 = vadd.f32 %v447, %v505
        %s507 = scalar_lea.vmem %s307, 7 [#allocation10]
        %v508 = vld [vmem:[%s507] ss:$8 sm:$0xf]
        %v509 = vadd.f32 %v508, 2.0
        %v510 = vxor.u32 %v509, 2147483648
        %v511 = vmul.f32 %v510, 1.442695
        %v512 = vpow.pop %v511
        %v513 = vadd.f32 %v512, 1.0
        %v514 = vrcp.pop %v513
        %v515 = vmul.f32 1.0, %v514
        %v516 = vadd.f32 %v515, 0.0001
        %v517 = vmul.f32 %v475, %v516
        %s518 = scalar_lea.vmem %s307, 34 [#allocation10]
        %v519 = vld [vmem:[%s518] ss:$8 sm:$0xf]
        %v520 = vadd.f32 %v517, %v519
        %v521 = vlog2.pop %v516
        %v522 = vmul.f32 %v521, 0.6931472
        %v523 = vadd.f32 %v506, %v522
        %s524 = scalar_lea.vmem %s307, 32 [#allocation10]
        %v525 = vld [vmem:[%s524] ss:$8 sm:$0xf]
        %v526 = vadd.f32 %v525, 2.0
        %v527 = vxor.u32 %v526, 2147483648
        %v528 = vmul.f32 %v527, 1.442695
        %v529 = vpow.pop %v528
        %v530 = vadd.f32 %v529, 1.0
        %v531 = vrcp.pop %v530
        %v532 = vmul.f32 1.0, %v531
        %v533 = vadd.f32 %v532, 0.0001
        %v534 = vmul.f32 %v489, %v533
        %s535 = scalar_lea.vmem %s307, 35 [#allocation10]
        %v536 = vld [vmem:[%s535] ss:$8 sm:$0xf]
        %v537 = vadd.f32 %v534, %v536
        %v538 = vlog2.pop %v533
        %v539 = vmul.f32 %v538, 0.6931472
        %v540 = vadd.f32 %v523, %v539
        %s541 = sld [smem:[#allocation3 + $0x12]]
        %v542 = vstv %s541
        %v543 = vmul.f32 %v503, %v542
        %s544 = sld [smem:[#allocation7 + $0x6]]
        %v545 = vstv %s544
        %v546 = vadd.f32 %v543, %v545
        %s547 = sld [smem:[#allocation3 + $0x13]]
        %v548 = vstv %s547
        %v549 = vmul.f32 %v520, %v548
        %v550 = vadd.f32 %v546, %v549
        %s551 = sld [smem:[#allocation3 + $0x14]]
        %v552 = vstv %s551
        %v553 = vmul.f32 %v537, %v552
        %v554 = vadd.f32 %v550, %v553
        %s555 = sld [smem:[#allocation3 + $0x15]]
        %v556 = vstv %s555
        %v557 = vmul.f32 %v503, %v556
        %s558 = sld [smem:[#allocation7 + $0x7]]
        %v559 = vstv %s558
        %v560 = vadd.f32 %v557, %v559
        %s561 = sld [smem:[#allocation3 + $0x16]]
        %v562 = vstv %s561
        %v563 = vmul.f32 %v520, %v562
        %v564 = vadd.f32 %v560, %v563
        %s565 = sld [smem:[#allocation3 + $0x17]]
        %v566 = vstv %s565
        %v567 = vmul.f32 %v537, %v566
        %v568 = vadd.f32 %v564, %v567
        %s569 = sld [smem:[#allocation3 + $0x18]]
        %v570 = vstv %s569
        %v571 = vmul.f32 %v503, %v570
        %s572 = sld [smem:[#allocation7 + $0x8]]
        %v573 = vstv %s572
        %v574 = vadd.f32 %v571, %v573
        %s575 = sld [smem:[#allocation3 + $0x19]]
        %v576 = vstv %s575
        %v577 = vmul.f32 %v520, %v576
        %v578 = vadd.f32 %v574, %v577
        %s579 = sld [smem:[#allocation3 + $0x1a]]
        %v580 = vstv %s579
        %v581 = vmul.f32 %v537, %v580
        %v582 = vadd.f32 %v578, %v581
        %s583 = scalar_lea.vmem %s307, 36 [#allocation10]
        %v584 = vld [vmem:[%s583] ss:$8 sm:$0xf]
        %v585 = vadd.f32 %v584, 2.0
        %v586 = vxor.u32 %v585, 2147483648
        %v587 = vmul.f32 %v586, 1.442695
        %v588 = vpow.pop %v587
        %v589 = vadd.f32 %v588, 1.0
        %v590 = vrcp.pop %v589
        %v591 = vmul.f32 1.0, %v590
        %v592 = vadd.f32 %v591, 0.0001
        %v593 = vmul.f32 %v554, %v592
        %s594 = scalar_lea.vmem %s307, 39 [#allocation10]
        %v595 = vld [vmem:[%s594] ss:$8 sm:$0xf]
        %v596 = vadd.f32 %v593, %v595
        %v597 = vlog2.pop %v592
        %v598 = vmul.f32 %v597, 0.6931472
        %v599 = vadd.f32 %v540, %v598
        %s600 = scalar_lea.vmem %s307, 37 [#allocation10]
        %v601 = vld [vmem:[%s600] ss:$8 sm:$0xf]
        %v602 = vadd.f32 %v601, 2.0
        %v603 = vxor.u32 %v602, 2147483648
        %v604 = vmul.f32 %v603, 1.442695
        %v605 = vpow.pop %v604
        %v606 = vadd.f32 %v605, 1.0
        %v607 = vrcp.pop %v606
        %v608 = vmul.f32 1.0, %v607
        %v609 = vadd.f32 %v608, 0.0001
        %v610 = vmul.f32 %v568, %v609
        %s611 = scalar_lea.vmem %s307, 64 [#allocation10]
        %v612 = vld [vmem:[%s611] ss:$8 sm:$0xf]
        %v613 = vadd.f32 %v610, %v612
        %v614 = vlog2.pop %v609
        %v615 = vmul.f32 %v614, 0.6931472
        %v616 = vadd.f32 %v599, %v615
        %s617 = scalar_lea.vmem %s307, 38 [#allocation10]
        %v618 = vld [vmem:[%s617] ss:$8 sm:$0xf]
        %v619 = vadd.f32 %v618, 2.0
        %v620 = vxor.u32 %v619, 2147483648
        %v621 = vmul.f32 %v620, 1.442695
        %v622 = vpow.pop %v621
        %v623 = vadd.f32 %v622, 1.0
        %v624 = vrcp.pop %v623
        %v625 = vmul.f32 1.0, %v624
        %v626 = vadd.f32 %v625, 0.0001
        %v627 = vmul.f32 %v582, %v626
        %s628 = scalar_lea.vmem %s307, 65 [#allocation10]
        %v629 = vld [vmem:[%s628] ss:$8 sm:$0xf]
        %v630 = vadd.f32 %v627, %v629
        %v631 = vlog2.pop %v626
        %v632 = vmul.f32 %v631, 0.6931472
        %v633 = vadd.f32 %v616, %v632
        %s634 = sld [smem:[#allocation3 + $0x1b]]
        %v635 = vstv %s634
        %v636 = vmul.f32 %v596, %v635
        %s637 = sld [smem:[#allocation7 + $0x9]]
        %v638 = vstv %s637
        %v639 = vadd.f32 %v636, %v638
        %s640 = sld [smem:[#allocation3 + $0x1c]]
        %v641 = vstv %s640
        %v642 = vmul.f32 %v613, %v641
        %v643 = vadd.f32 %v639, %v642
        %s644 = sld [smem:[#allocation3 + $0x1d]]
        %v645 = vstv %s644
        %v646 = vmul.f32 %v630, %v645
        %v647 = vadd.f32 %v643, %v646
        %s648 = sld [smem:[#allocation3 + $0x1e]]
        %v649 = vstv %s648
        %v650 = vmul.f32 %v596, %v649
        %s651 = sld [smem:[#allocation7 + $0xa]]
        %v652 = vstv %s651
        %v653 = vadd.f32 %v650, %v652
        %s654 = sld [smem:[#allocation3 + $0x1f]]
        %v655 = vstv %s654
        %v656 = vmul.f32 %v613, %v655
        %v657 = vadd.f32 %v653, %v656
        %s658 = sld [smem:[#allocation3 + $0x20]]
        %v659 = vstv %s658
        %v660 = vmul.f32 %v630, %v659
        %v661 = vadd.f32 %v657, %v660
        %s662 = sld [smem:[#allocation3 + $0x21]]
        %v663 = vstv %s662
        %v664 = vmul.f32 %v596, %v663
        %s665 = sld [smem:[#allocation7 + $0xb]]
        %v666 = vstv %s665
        %v667 = vadd.f32 %v664, %v666
        %s668 = sld [smem:[#allocation3 + $0x22]]
        %v669 = vstv %s668
        %v670 = vmul.f32 %v613, %v669
        %v671 = vadd.f32 %v667, %v670
        %s672 = sld [smem:[#allocation3 + $0x23]]
        %v673 = vstv %s672
        %v674 = vmul.f32 %v630, %v673
        %v675 = vadd.f32 %v671, %v674
        %s676 = scalar_lea.vmem %s307, 66 [#allocation10]
        %v677 = vld [vmem:[%s676] ss:$8 sm:$0xf]
        %v678 = vadd.f32 %v677, 2.0
        %v679 = vxor.u32 %v678, 2147483648
        %v680 = vmul.f32 %v679, 1.442695
        %v681 = vpow.pop %v680
        %v682 = vadd.f32 %v681, 1.0
        %v683 = vrcp.pop %v682
        %v684 = vmul.f32 1.0, %v683
        %v685 = vadd.f32 %v684, 0.0001
        %v686 = vmul.f32 %v647, %v685
        %s687 = scalar_lea.vmem %s307, 69 [#allocation10]
        %v688 = vld [vmem:[%s687] ss:$8 sm:$0xf]
        %v689 = vadd.f32 %v686, %v688
        %v690 = vlog2.pop %v685
        %v691 = vmul.f32 %v690, 0.6931472
        %v692 = vadd.f32 %v633, %v691
        %s693 = scalar_lea.vmem %s307, 67 [#allocation10]
        %v694 = vld [vmem:[%s693] ss:$8 sm:$0xf]
        %v695 = vadd.f32 %v694, 2.0
        %v696 = vxor.u32 %v695, 2147483648
        %v697 = vmul.f32 %v696, 1.442695
        %v698 = vpow.pop %v697
        %v699 = vadd.f32 %v698, 1.0
        %v700 = vrcp.pop %v699
        %v701 = vmul.f32 1.0, %v700
        %v702 = vadd.f32 %v701, 0.0001
        %v703 = vmul.f32 %v661, %v702
        %s704 = scalar_lea.vmem %s307, 70 [#allocation10]
        %v705 = vld [vmem:[%s704] ss:$8 sm:$0xf]
        %v706 = vadd.f32 %v703, %v705
        %v707 = vlog2.pop %v702
        %v708 = vmul.f32 %v707, 0.6931472
        %v709 = vadd.f32 %v692, %v708
        %s710 = scalar_lea.vmem %s307, 68 [#allocation10]
        %v711 = vld [vmem:[%s710] ss:$8 sm:$0xf]
        %v712 = vadd.f32 %v711, 2.0
        %v713 = vxor.u32 %v712, 2147483648
        %v714 = vmul.f32 %v713, 1.442695
        %v715 = vpow.pop %v714
        %v716 = vadd.f32 %v715, 1.0
        %v717 = vrcp.pop %v716
        %v718 = vmul.f32 1.0, %v717
        %v719 = vadd.f32 %v718, 0.0001
        %v720 = vmul.f32 %v675, %v719
        %s721 = scalar_lea.vmem %s307, 71 [#allocation10]
        %v722 = vld [vmem:[%s721] ss:$8 sm:$0xf]
        %v723 = vadd.f32 %v720, %v722
        %v724 = vlog2.pop %v719
        %v725 = vmul.f32 %v724, 0.6931472
        %v726 = vadd.f32 %v709, %v725
        %s727 = sld [smem:[#allocation3 + $0x24]]
        %v728 = vstv %s727
        %v729 = vmul.f32 %v689, %v728
        %s730 = sld [smem:[#allocation7 + $0xc]]
        %v731 = vstv %s730
        %v732 = vadd.f32 %v729, %v731
        %s733 = sld [smem:[#allocation3 + $0x25]]
        %v734 = vstv %s733
        %v735 = vmul.f32 %v706, %v734
        %v736 = vadd.f32 %v732, %v735
        %s737 = sld [smem:[#allocation3 + $0x26]]
        %v738 = vstv %s737
        %v739 = vmul.f32 %v723, %v738
        %v740 = vadd.f32 %v736, %v739
        %s741 = sld [smem:[#allocation3 + $0x27]]
        %v742 = vstv %s741
        %v743 = vmul.f32 %v689, %v742
        %s744 = sld [smem:[#allocation7 + $0xd]]
        %v745 = vstv %s744
        %v746 = vadd.f32 %v743, %v745
        %s747 = sld [smem:[#allocation3 + $0x28]]
        %v748 = vstv %s747
        %v749 = vmul.f32 %v706, %v748
        %v750 = vadd.f32 %v746, %v749
        %s751 = sld [smem:[#allocation3 + $0x29]]
        %v752 = vstv %s751
        %v753 = vmul.f32 %v723, %v752
        %v754 = vadd.f32 %v750, %v753
        %s755 = sld [smem:[#allocation3 + $0x2a]]
        %v756 = vstv %s755
        %v757 = vmul.f32 %v689, %v756
        %s758 = sld [smem:[#allocation7 + $0xe]]
        %v759 = vstv %s758
        %v760 = vadd.f32 %v757, %v759
        %s761 = sld [smem:[#allocation3 + $0x2b]]
        %v762 = vstv %s761
        %v763 = vmul.f32 %v706, %v762
        %v764 = vadd.f32 %v760, %v763
        %s765 = sld [smem:[#allocation3 + $0x2c]]
        %v766 = vstv %s765
        %v767 = vmul.f32 %v723, %v766
        %v768 = vadd.f32 %v764, %v767
        %s769 = scalar_lea.vmem %s307, 96 [#allocation10]
        %v770 = vld [vmem:[%s769] ss:$8 sm:$0xf]
        %v771 = vadd.f32 %v770, 2.0
        %v772 = vxor.u32 %v771, 2147483648
        %v773 = vmul.f32 %v772, 1.442695
        %v774 = vpow.pop %v773
        %v775 = vadd.f32 %v774, 1.0
        %v776 = vrcp.pop %v775
        %v777 = vmul.f32 1.0, %v776
        %v778 = vadd.f32 %v777, 0.0001
        %v779 = vmul.f32 %v740, %v778
        %s780 = scalar_lea.vmem %s307, 99 [#allocation10]
        %v781 = vld [vmem:[%s780] ss:$8 sm:$0xf]
        %v782 = vadd.f32 %v779, %v781
        %v783 = vlog2.pop %v778
        %v784 = vmul.f32 %v783, 0.6931472
        %v785 = vadd.f32 %v726, %v784
        %s786 = scalar_lea.vmem %s307, 97 [#allocation10]
        %v787 = vld [vmem:[%s786] ss:$8 sm:$0xf]
        %v788 = vadd.f32 %v787, 2.0
        %v789 = vxor.u32 %v788, 2147483648
        %v790 = vmul.f32 %v789, 1.442695
        %v791 = vpow.pop %v790
        %v792 = vadd.f32 %v791, 1.0
        %v793 = vrcp.pop %v792
        %v794 = vmul.f32 1.0, %v793
        %v795 = vadd.f32 %v794, 0.0001
        %v796 = vmul.f32 %v754, %v795
        %s797 = scalar_lea.vmem %s307, 100 [#allocation10]
        %v798 = vld [vmem:[%s797] ss:$8 sm:$0xf]
        %v799 = vadd.f32 %v796, %v798
        %v800 = vlog2.pop %v795
        %v801 = vmul.f32 %v800, 0.6931472
        %v802 = vadd.f32 %v785, %v801
        %s803 = scalar_lea.vmem %s307, 98 [#allocation10]
        %v804 = vld [vmem:[%s803] ss:$8 sm:$0xf]
        %v805 = vadd.f32 %v804, 2.0
        %v806 = vxor.u32 %v805, 2147483648
        %v807 = vmul.f32 %v806, 1.442695
        %v808 = vpow.pop %v807
        %v809 = vadd.f32 %v808, 1.0
        %v810 = vrcp.pop %v809
        %v811 = vmul.f32 1.0, %v810
        %v812 = vadd.f32 %v811, 0.0001
        %v813 = vmul.f32 %v768, %v812
        %s814 = scalar_lea.vmem %s307, 101 [#allocation10]
        %v815 = vld [vmem:[%s814] ss:$8 sm:$0xf]
        %v816 = vadd.f32 %v813, %v815
        %v817 = vlog2.pop %v812
        %v818 = vmul.f32 %v817, 0.6931472
        %v819 = vadd.f32 %v802, %v818
        %s820 = sld [smem:[#allocation3 + $0x2d]]
        %v821 = vstv %s820
        %v822 = vmul.f32 %v782, %v821
        %s823 = sld [smem:[#allocation7 + $0xf]]
        %v824 = vstv %s823
        %v825 = vadd.f32 %v822, %v824
        %s826 = sld [smem:[#allocation3 + $0x2e]]
        %v827 = vstv %s826
        %v828 = vmul.f32 %v799, %v827
        %v829 = vadd.f32 %v825, %v828
        %s830 = sld [smem:[#allocation3 + $0x2f]]
        %v831 = vstv %s830
        %v832 = vmul.f32 %v816, %v831
        %v833 = vadd.f32 %v829, %v832
        %s834 = sld [smem:[#allocation3 + $0x30]]
        %v835 = vstv %s834
        %v836 = vmul.f32 %v782, %v835
        %s837 = sld [smem:[#allocation7 + $0x10]]
        %v838 = vstv %s837
        %v839 = vadd.f32 %v836, %v838
        %s840 = sld [smem:[#allocation3 + $0x31]]
        %v841 = vstv %s840
        %v842 = vmul.f32 %v799, %v841
        %v843 = vadd.f32 %v839, %v842
        %s844 = sld [smem:[#allocation3 + $0x32]]
        %v845 = vstv %s844
        %v846 = vmul.f32 %v816, %v845
        %v847 = vadd.f32 %v843, %v846
        %s848 = sld [smem:[#allocation3 + $0x33]]
        %v849 = vstv %s848
        %v850 = vmul.f32 %v782, %v849
        %s851 = sld [smem:[#allocation7 + $0x11]]
        %v852 = vstv %s851
        %v853 = vadd.f32 %v850, %v852
        %s854 = sld [smem:[#allocation3 + $0x34]]
        %v855 = vstv %s854
        %v856 = vmul.f32 %v799, %v855
        %v857 = vadd.f32 %v853, %v856
        %s858 = sld [smem:[#allocation3 + $0x35]]
        %v859 = vstv %s858
        %v860 = vmul.f32 %v816, %v859
        %v861 = vadd.f32 %v857, %v860
        %s862 = scalar_lea.vmem %s307, 102 [#allocation10]
        %v863 = vld [vmem:[%s862] ss:$8 sm:$0xf]
        %v864 = vadd.f32 %v863, 2.0
        %v865 = vxor.u32 %v864, 2147483648
        %v866 = vmul.f32 %v865, 1.442695
        %v867 = vpow.pop %v866
        %v868 = vadd.f32 %v867, 1.0
        %v869 = vrcp.pop %v868
        %v870 = vmul.f32 1.0, %v869
        %v871 = vadd.f32 %v870, 0.0001
        %v872 = vmul.f32 %v833, %v871
        %s873 = scalar_lea.vmem %s307, 129 [#allocation10]
        %v874 = vld [vmem:[%s873] ss:$8 sm:$0xf]
        %v875 = vadd.f32 %v872, %v874
        %v876 = vlog2.pop %v871
        %v877 = vmul.f32 %v876, 0.6931472
        %v878 = vadd.f32 %v819, %v877
        %s879 = scalar_lea.vmem %s307, 103 [#allocation10]
        %v880 = vld [vmem:[%s879] ss:$8 sm:$0xf]
        %v881 = vadd.f32 %v880, 2.0
        %v882 = vxor.u32 %v881, 2147483648
        %v883 = vmul.f32 %v882, 1.442695
        %v884 = vpow.pop %v883
        %v885 = vadd.f32 %v884, 1.0
        %v886 = vrcp.pop %v885
        %v887 = vmul.f32 1.0, %v886
        %v888 = vadd.f32 %v887, 0.0001
        %v889 = vmul.f32 %v847, %v888
        %s890 = scalar_lea.vmem %s307, 130 [#allocation10]
        %v891 = vld [vmem:[%s890] ss:$8 sm:$0xf]
        %v892 = vadd.f32 %v889, %v891
        %v893 = vlog2.pop %v888
        %v894 = vmul.f32 %v893, 0.6931472
        %v895 = vadd.f32 %v878, %v894
        %s896 = scalar_lea.vmem %s307, 128 [#allocation10]
        %v897 = vld [vmem:[%s896] ss:$8 sm:$0xf]
        %v898 = vadd.f32 %v897, 2.0
        %v899 = vxor.u32 %v898, 2147483648
        %v900 = vmul.f32 %v899, 1.442695
        %v901 = vpow.pop %v900
        %v902 = vadd.f32 %v901, 1.0
        %v903 = vrcp.pop %v902
        %v904 = vmul.f32 1.0, %v903
        %v905 = vadd.f32 %v904, 0.0001
        %v906 = vmul.f32 %v861, %v905
        %s907 = scalar_lea.vmem %s307, 131 [#allocation10]
        %v908 = vld [vmem:[%s907] ss:$8 sm:$0xf]
        %v909 = vadd.f32 %v906, %v908
        %v910 = vlog2.pop %v905
        %v911 = vmul.f32 %v910, 0.6931472
        %v912 = vadd.f32 %v895, %v911
        %s913 = sld [smem:[#allocation3 + $0x36]]
        %v914 = vstv %s913
        %v915 = vmul.f32 %v875, %v914
        %s916 = sld [smem:[#allocation7 + $0x12]]
        %v917 = vstv %s916
        %v918 = vadd.f32 %v915, %v917
        %s919 = sld [smem:[#allocation3 + $0x37]]
        %v920 = vstv %s919
        %v921 = vmul.f32 %v892, %v920
        %v922 = vadd.f32 %v918, %v921
        %s923 = sld [smem:[#allocation3 + $0x38]]
        %v924 = vstv %s923
        %v925 = vmul.f32 %v909, %v924
        %v926 = vadd.f32 %v922, %v925
        %s927 = sld [smem:[#allocation3 + $0x39]]
        %v928 = vstv %s927
        %v929 = vmul.f32 %v875, %v928
        %s930 = sld [smem:[#allocation7 + $0x13]]
        %v931 = vstv %s930
        %v932 = vadd.f32 %v929, %v931
        %s933 = sld [smem:[#allocation3 + $0x3a]]
        %v934 = vstv %s933
        %v935 = vmul.f32 %v892, %v934
        %v936 = vadd.f32 %v932, %v935
        %s937 = sld [smem:[#allocation3 + $0x3b]]
        %v938 = vstv %s937
        %v939 = vmul.f32 %v909, %v938
        %v940 = vadd.f32 %v936, %v939
        %s941 = sld [smem:[#allocation3 + $0x3c]]
        %v942 = vstv %s941
        %v943 = vmul.f32 %v875, %v942
        %s944 = sld [smem:[#allocation7 + $0x14]]
        %v945 = vstv %s944
        %v946 = vadd.f32 %v943, %v945
        %s947 = sld [smem:[#allocation3 + $0x3d]]
        %v948 = vstv %s947
        %v949 = vmul.f32 %v892, %v948
        %v950 = vadd.f32 %v946, %v949
        %s951 = sld [smem:[#allocation3 + $0x3e]]
        %v952 = vstv %s951
        %v953 = vmul.f32 %v909, %v952
        %v954 = vadd.f32 %v950, %v953
        %s955 = scalar_lea.vmem %s307, 132 [#allocation10]
        %v956 = vld [vmem:[%s955] ss:$8 sm:$0xf]
        %v957 = vadd.f32 %v956, 2.0
        %v958 = vxor.u32 %v957, 2147483648
        %v959 = vmul.f32 %v958, 1.442695
        %v960 = vpow.pop %v959
        %v961 = vadd.f32 %v960, 1.0
        %v962 = vrcp.pop %v961
        %v963 = vmul.f32 1.0, %v962
        %v964 = vadd.f32 %v963, 0.0001
        %v965 = vmul.f32 %v926, %v964
        %s966 = scalar_lea.vmem %s307, 135 [#allocation10]
        %v967 = vld [vmem:[%s966] ss:$8 sm:$0xf]
        %v968 = vadd.f32 %v965, %v967
        %v969 = vlog2.pop %v964
        %v970 = vmul.f32 %v969, 0.6931472
        %v971 = vadd.f32 %v912, %v970
        %s972 = scalar_lea.vmem %s307, 133 [#allocation10]
        %v973 = vld [vmem:[%s972] ss:$8 sm:$0xf]
        %v974 = vadd.f32 %v973, 2.0
        %v975 = vxor.u32 %v974, 2147483648
        %v976 = vmul.f32 %v975, 1.442695
        %v977 = vpow.pop %v976
        %v978 = vadd.f32 %v977, 1.0
        %v979 = vrcp.pop %v978
        %v980 = vmul.f32 1.0, %v979
        %v981 = vadd.f32 %v980, 0.0001
        %v982 = vmul.f32 %v940, %v981
        %s983 = scalar_lea.vmem %s307, 160 [#allocation10]
        %v984 = vld [vmem:[%s983] ss:$8 sm:$0xf]
        %v985 = vadd.f32 %v982, %v984
        %v986 = vlog2.pop %v981
        %v987 = vmul.f32 %v986, 0.6931472
        %v988 = vadd.f32 %v971, %v987
        %s989 = scalar_lea.vmem %s307, 134 [#allocation10]
        %v990 = vld [vmem:[%s989] ss:$8 sm:$0xf]
        %v991 = vadd.f32 %v990, 2.0
        %v992 = vxor.u32 %v991, 2147483648
        %v993 = vmul.f32 %v992, 1.442695
        %v994 = vpow.pop %v993
        %v995 = vadd.f32 %v994, 1.0
        %v996 = vrcp.pop %v995
        %v997 = vmul.f32 1.0, %v996
        %v998 = vadd.f32 %v997, 0.0001
        %v999 = vmul.f32 %v954, %v998
        %s1000 = scalar_lea.vmem %s307, 161 [#allocation10]
        %v1001 = vld [vmem:[%s1000] ss:$8 sm:$0xf]
        %v1002 = vadd.f32 %v999, %v1001
        %v1003 = vlog2.pop %v998
        %v1004 = vmul.f32 %v1003, 0.6931472
        %v1005 = vadd.f32 %v988, %v1004
        %s1006 = sld [smem:[#allocation3 + $0x3f]]
        %v1007 = vstv %s1006
        %v1008 = vmul.f32 %v968, %v1007
        %s1009 = sld [smem:[#allocation7 + $0x15]]
        %v1010 = vstv %s1009
        %v1011 = vadd.f32 %v1008, %v1010
        %s1012 = sld [smem:[#allocation3 + $0x40]]
        %v1013 = vstv %s1012
        %v1014 = vmul.f32 %v985, %v1013
        %v1015 = vadd.f32 %v1011, %v1014
        %s1016 = sld [smem:[#allocation3 + $0x41]]
        %v1017 = vstv %s1016
        %v1018 = vmul.f32 %v1002, %v1017
        %v1019 = vadd.f32 %v1015, %v1018
        %s1020 = sld [smem:[#allocation3 + $0x42]]
        %v1021 = vstv %s1020
        %v1022 = vmul.f32 %v968, %v1021
        %s1023 = sld [smem:[#allocation7 + $0x16]]
        %v1024 = vstv %s1023
        %v1025 = vadd.f32 %v1022, %v1024
        %s1026 = sld [smem:[#allocation3 + $0x43]]
        %v1027 = vstv %s1026
        %v1028 = vmul.f32 %v985, %v1027
        %v1029 = vadd.f32 %v1025, %v1028
        %s1030 = sld [smem:[#allocation3 + $0x44]]
        %v1031 = vstv %s1030
        %v1032 = vmul.f32 %v1002, %v1031
        %v1033 = vadd.f32 %v1029, %v1032
        %s1034 = sld [smem:[#allocation3 + $0x45]]
        %v1035 = vstv %s1034
        %v1036 = vmul.f32 %v968, %v1035
        %s1037 = sld [smem:[#allocation7 + $0x17]]
        %v1038 = vstv %s1037
        %v1039 = vadd.f32 %v1036, %v1038
        %s1040 = sld [smem:[#allocation3 + $0x46]]
        %v1041 = vstv %s1040
        %v1042 = vmul.f32 %v985, %v1041
        %v1043 = vadd.f32 %v1039, %v1042
        %s1044 = sld [smem:[#allocation3 + $0x47]]
        %v1045 = vstv %s1044
        %v1046 = vmul.f32 %v1002, %v1045
        %v1047 = vadd.f32 %v1043, %v1046
        %s1048 = scalar_lea.vmem %s307, 162 [#allocation10]
        %v1049 = vld [vmem:[%s1048] ss:$8 sm:$0xf]
        %v1050 = vadd.f32 %v1049, 2.0
        %v1051 = vxor.u32 %v1050, 2147483648
        %v1052 = vmul.f32 %v1051, 1.442695
        %v1053 = vpow.pop %v1052
        %v1054 = vadd.f32 %v1053, 1.0
        %v1055 = vrcp.pop %v1054
        %v1056 = vmul.f32 1.0, %v1055
        %v1057 = vadd.f32 %v1056, 0.0001
        %v1058 = vmul.f32 %v1019, %v1057
        %s1059 = scalar_lea.vmem %s307, 165 [#allocation10]
        %v1060 = vld [vmem:[%s1059] ss:$8 sm:$0xf]
        %v1061 = vadd.f32 %v1058, %v1060
        %v1062 = vlog2.pop %v1057
        %v1063 = vmul.f32 %v1062, 0.6931472
        %v1064 = vadd.f32 %v1005, %v1063
        %s1065 = scalar_lea.vmem %s307, 163 [#allocation10]
        %v1066 = vld [vmem:[%s1065] ss:$8 sm:$0xf]
        %v1067 = vadd.f32 %v1066, 2.0
        %v1068 = vxor.u32 %v1067, 2147483648
        %v1069 = vmul.f32 %v1068, 1.442695
        %v1070 = vpow.pop %v1069
        %v1071 = vadd.f32 %v1070, 1.0
        %v1072 = vrcp.pop %v1071
        %v1073 = vmul.f32 1.0, %v1072
        %v1074 = vadd.f32 %v1073, 0.0001
        %v1075 = vmul.f32 %v1033, %v1074
        %s1076 = scalar_lea.vmem %s307, 166 [#allocation10]
        %v1077 = vld [vmem:[%s1076] ss:$8 sm:$0xf]
        %v1078 = vadd.f32 %v1075, %v1077
        %v1079 = vlog2.pop %v1074
        %v1080 = vmul.f32 %v1079, 0.6931472
        %v1081 = vadd.f32 %v1064, %v1080
        %s1082 = scalar_lea.vmem %s307, 164 [#allocation10]
        %v1083 = vld [vmem:[%s1082] ss:$8 sm:$0xf]
        %v1084 = vadd.f32 %v1083, 2.0
        %v1085 = vxor.u32 %v1084, 2147483648
        %v1086 = vmul.f32 %v1085, 1.442695
        %v1087 = vpow.pop %v1086
        %v1088 = vadd.f32 %v1087, 1.0
        %v1089 = vrcp.pop %v1088
        %v1090 = vmul.f32 1.0, %v1089
        %v1091 = vadd.f32 %v1090, 0.0001
        %v1092 = vmul.f32 %v1047, %v1091
        %s1093 = scalar_lea.vmem %s307, 167 [#allocation10]
        %v1094 = vld [vmem:[%s1093] ss:$8 sm:$0xf]
        %v1095 = vadd.f32 %v1092, %v1094
        %v1096 = vlog2.pop %v1091
        %v1097 = vmul.f32 %v1096, 0.6931472
        %v1098 = vadd.f32 %v1081, %v1097
        %s1099 = sld [smem:[#allocation3 + $0x48]]
        %v1100 = vstv %s1099
        %v1101 = vmul.f32 %v1061, %v1100
        %s1102 = sld [smem:[#allocation7 + $0x18]]
        %v1103 = vstv %s1102
        %v1104 = vadd.f32 %v1101, %v1103
        %s1105 = sld [smem:[#allocation3 + $0x49]]
        %v1106 = vstv %s1105
        %v1107 = vmul.f32 %v1078, %v1106
        %v1108 = vadd.f32 %v1104, %v1107
        %s1109 = sld [smem:[#allocation3 + $0x4a]]
        %v1110 = vstv %s1109
        %v1111 = vmul.f32 %v1095, %v1110
        %v1112 = vadd.f32 %v1108, %v1111
        %s1113 = sld [smem:[#allocation3 + $0x4b]]
        %v1114 = vstv %s1113
        %v1115 = vmul.f32 %v1061, %v1114
        %s1116 = sld [smem:[#allocation7 + $0x19]]
        %v1117 = vstv %s1116
        %v1118 = vadd.f32 %v1115, %v1117
        %s1119 = sld [smem:[#allocation3 + $0x4c]]
        %v1120 = vstv %s1119
        %v1121 = vmul.f32 %v1078, %v1120
        %v1122 = vadd.f32 %v1118, %v1121
        %s1123 = sld [smem:[#allocation3 + $0x4d]]
        %v1124 = vstv %s1123
        %v1125 = vmul.f32 %v1095, %v1124
        %v1126 = vadd.f32 %v1122, %v1125
        %s1127 = sld [smem:[#allocation3 + $0x4e]]
        %v1128 = vstv %s1127
        %v1129 = vmul.f32 %v1061, %v1128
        %s1130 = sld [smem:[#allocation7 + $0x1a]]
        %v1131 = vstv %s1130
        %v1132 = vadd.f32 %v1129, %v1131
        %s1133 = sld [smem:[#allocation3 + $0x4f]]
        %v1134 = vstv %s1133
        %v1135 = vmul.f32 %v1078, %v1134
        %v1136 = vadd.f32 %v1132, %v1135
        %s1137 = sld [smem:[#allocation3 + $0x50]]
        %v1138 = vstv %s1137
        %v1139 = vmul.f32 %v1095, %v1138
        %v1140 = vadd.f32 %v1136, %v1139
        %s1141 = scalar_lea.vmem %s307, 192 [#allocation10]
        %v1142 = vld [vmem:[%s1141] ss:$8 sm:$0xf]
        %v1143 = vadd.f32 %v1142, 2.0
        %v1144 = vxor.u32 %v1143, 2147483648
        %v1145 = vmul.f32 %v1144, 1.442695
        %v1146 = vpow.pop %v1145
        %v1147 = vadd.f32 %v1146, 1.0
        %v1148 = vrcp.pop %v1147
        %v1149 = vmul.f32 1.0, %v1148
        %v1150 = vadd.f32 %v1149, 0.0001
        %v1151 = vmul.f32 %v1112, %v1150
        %s1152 = scalar_lea.vmem %s307, 195 [#allocation10]
        %v1153 = vld [vmem:[%s1152] ss:$8 sm:$0xf]
        %v1154 = vadd.f32 %v1151, %v1153
        %v1155 = vlog2.pop %v1150
        %v1156 = vmul.f32 %v1155, 0.6931472
        %v1157 = vadd.f32 %v1098, %v1156
        %s1158 = scalar_lea.vmem %s307, 193 [#allocation10]
        %v1159 = vld [vmem:[%s1158] ss:$8 sm:$0xf]
        %v1160 = vadd.f32 %v1159, 2.0
        %v1161 = vxor.u32 %v1160, 2147483648
        %v1162 = vmul.f32 %v1161, 1.442695
        %v1163 = vpow.pop %v1162
        %v1164 = vadd.f32 %v1163, 1.0
        %v1165 = vrcp.pop %v1164
        %v1166 = vmul.f32 1.0, %v1165
        %v1167 = vadd.f32 %v1166, 0.0001
        %v1168 = vmul.f32 %v1126, %v1167
        %s1169 = scalar_lea.vmem %s307, 196 [#allocation10]
        %v1170 = vld [vmem:[%s1169] ss:$8 sm:$0xf]
        %v1171 = vadd.f32 %v1168, %v1170
        %v1172 = vlog2.pop %v1167
        %v1173 = vmul.f32 %v1172, 0.6931472
        %v1174 = vadd.f32 %v1157, %v1173
        %s1175 = scalar_lea.vmem %s307, 194 [#allocation10]
        %v1176 = vld [vmem:[%s1175] ss:$8 sm:$0xf]
        %v1177 = vadd.f32 %v1176, 2.0
        %v1178 = vxor.u32 %v1177, 2147483648
        %v1179 = vmul.f32 %v1178, 1.442695
        %v1180 = vpow.pop %v1179
        %v1181 = vadd.f32 %v1180, 1.0
        %v1182 = vrcp.pop %v1181
        %v1183 = vmul.f32 1.0, %v1182
        %v1184 = vadd.f32 %v1183, 0.0001
        %v1185 = vmul.f32 %v1140, %v1184
        %s1186 = scalar_lea.vmem %s307, 197 [#allocation10]
        %v1187 = vld [vmem:[%s1186] ss:$8 sm:$0xf]
        %v1188 = vadd.f32 %v1185, %v1187
        %v1189 = vlog2.pop %v1184
        %v1190 = vmul.f32 %v1189, 0.6931472
        %v1191 = vadd.f32 %v1174, %v1190
        %s1192 = sld [smem:[#allocation3 + $0x51]]
        %v1193 = vstv %s1192
        %v1194 = vmul.f32 %v1154, %v1193
        %s1195 = sld [smem:[#allocation7 + $0x1b]]
        %v1196 = vstv %s1195
        %v1197 = vadd.f32 %v1194, %v1196
        %s1198 = sld [smem:[#allocation3 + $0x52]]
        %v1199 = vstv %s1198
        %v1200 = vmul.f32 %v1171, %v1199
        %v1201 = vadd.f32 %v1197, %v1200
        %s1202 = sld [smem:[#allocation3 + $0x53]]
        %v1203 = vstv %s1202
        %v1204 = vmul.f32 %v1188, %v1203
        %v1205 = vadd.f32 %v1201, %v1204
        %s1206 = sld [smem:[#allocation3 + $0x54]]
        %v1207 = vstv %s1206
        %v1208 = vmul.f32 %v1154, %v1207
        %s1209 = sld [smem:[#allocation7 + $0x1c]]
        %v1210 = vstv %s1209
        %v1211 = vadd.f32 %v1208, %v1210
        %s1212 = sld [smem:[#allocation3 + $0x55]]
        %v1213 = vstv %s1212
        %v1214 = vmul.f32 %v1171, %v1213
        %v1215 = vadd.f32 %v1211, %v1214
        %s1216 = sld [smem:[#allocation3 + $0x56]]
        %v1217 = vstv %s1216
        %v1218 = vmul.f32 %v1188, %v1217
        %v1219 = vadd.f32 %v1215, %v1218
        %s1220 = sld [smem:[#allocation3 + $0x57]]
        %v1221 = vstv %s1220
        %v1222 = vmul.f32 %v1154, %v1221
        %s1223 = sld [smem:[#allocation7 + $0x1d]]
        %v1224 = vstv %s1223
        %v1225 = vadd.f32 %v1222, %v1224
        %s1226 = sld [smem:[#allocation3 + $0x58]]
        %v1227 = vstv %s1226
        %v1228 = vmul.f32 %v1171, %v1227
        %v1229 = vadd.f32 %v1225, %v1228
        %s1230 = sld [smem:[#allocation3 + $0x59]]
        %v1231 = vstv %s1230
        %v1232 = vmul.f32 %v1188, %v1231
        %v1233 = vadd.f32 %v1229, %v1232
        %s1234 = scalar_lea.vmem %s307, 198 [#allocation10]
        %v1235 = vld [vmem:[%s1234] ss:$8 sm:$0xf]
        %v1236 = vadd.f32 %v1235, 2.0
        %v1237 = vxor.u32 %v1236, 2147483648
        %v1238 = vmul.f32 %v1237, 1.442695
        %v1239 = vpow.pop %v1238
        %v1240 = vadd.f32 %v1239, 1.0
        %v1241 = vrcp.pop %v1240
        %v1242 = vmul.f32 1.0, %v1241
        %v1243 = vadd.f32 %v1242, 0.0001
        %v1244 = vmul.f32 %v1205, %v1243
        %s1245 = scalar_lea.vmem %s307, 225 [#allocation10]
        %v1246 = vld [vmem:[%s1245] ss:$8 sm:$0xf]
        %v1247 = vadd.f32 %v1244, %v1246
        %v1248 = vlog2.pop %v1243
        %v1249 = vmul.f32 %v1248, 0.6931472
        %v1250 = vadd.f32 %v1191, %v1249
        %s1251 = scalar_lea.vmem %s307, 199 [#allocation10]
        %v1252 = vld [vmem:[%s1251] ss:$8 sm:$0xf]
        %v1253 = vadd.f32 %v1252, 2.0
        %v1254 = vxor.u32 %v1253, 2147483648
        %v1255 = vmul.f32 %v1254, 1.442695
        %v1256 = vpow.pop %v1255
        %v1257 = vadd.f32 %v1256, 1.0
        %v1258 = vrcp.pop %v1257
        %v1259 = vmul.f32 1.0, %v1258
        %v1260 = vadd.f32 %v1259, 0.0001
        %v1261 = vmul.f32 %v1219, %v1260
        %s1262 = scalar_lea.vmem %s307, 226 [#allocation10]
        %v1263 = vld [vmem:[%s1262] ss:$8 sm:$0xf]
        %v1264 = vadd.f32 %v1261, %v1263
        %v1265 = vlog2.pop %v1260
        %v1266 = vmul.f32 %v1265, 0.6931472
        %v1267 = vadd.f32 %v1250, %v1266
        %s1268 = scalar_lea.vmem %s307, 224 [#allocation10]
        %v1269 = vld [vmem:[%s1268] ss:$8 sm:$0xf]
        %v1270 = vadd.f32 %v1269, 2.0
        %v1271 = vxor.u32 %v1270, 2147483648
        %v1272 = vmul.f32 %v1271, 1.442695
        %v1273 = vpow.pop %v1272
        %v1274 = vadd.f32 %v1273, 1.0
        %v1275 = vrcp.pop %v1274
        %v1276 = vmul.f32 1.0, %v1275
        %v1277 = vadd.f32 %v1276, 0.0001
        %v1278 = vmul.f32 %v1233, %v1277
        %s1279 = scalar_lea.vmem %s307, 227 [#allocation10]
        %v1280 = vld [vmem:[%s1279] ss:$8 sm:$0xf]
        %v1281 = vadd.f32 %v1278, %v1280
        %v1282 = vlog2.pop %v1277
        %v1283 = vmul.f32 %v1282, 0.6931472
        %v1284 = vadd.f32 %v1267, %v1283
        %s1285 = sld [smem:[#allocation3 + $0x5a]]
        %v1286 = vstv %s1285
        %v1287 = vmul.f32 %v1247, %v1286
        %s1288 = sld [smem:[#allocation7 + $0x1e]]
        %v1289 = vstv %s1288
        %v1290 = vadd.f32 %v1287, %v1289
        %s1291 = sld [smem:[#allocation3 + $0x5b]]
        %v1292 = vstv %s1291
        %v1293 = vmul.f32 %v1264, %v1292
        %v1294 = vadd.f32 %v1290, %v1293
        %s1295 = sld [smem:[#allocation3 + $0x5c]]
        %v1296 = vstv %s1295
        %v1297 = vmul.f32 %v1281, %v1296
        %v1298 = vadd.f32 %v1294, %v1297
        %v1299 = vlaneseq
        %vm1300 = vcmp.ge.s32.totalorder %v1299, 0
        %vm1301 = vcmp.lt.s32.totalorder %v1299, 512
        %vm1302 = vmand %vm1300, %vm1301
        %1303 = vst.msk [vmem:[%s339] ss:$4 sm:$0xf] %vm1302, %v1298
        %v1304 = vmul.f32 %v1298, %v1298
        %v1305 = vadd.f32 %v1304, 1.837877
        %v1306 = vmul.f32 %v1305, 0.5
        %v1307 = vsub.f32 %v1284, %v1306
        %s1308 = sld [smem:[#allocation3 + $0x5d]]
        %v1309 = vstv %s1308
        %v1310 = vmul.f32 %v1247, %v1309
        %s1311 = sld [smem:[#allocation7 + $0x1f]]
        %v1312 = vstv %s1311
        %v1313 = vadd.f32 %v1310, %v1312
        %s1314 = sld [smem:[#allocation3 + $0x5e]]
        %v1315 = vstv %s1314
        %v1316 = vmul.f32 %v1264, %v1315
        %v1317 = vadd.f32 %v1313, %v1316
        %s1318 = sld [smem:[#allocation3 + $0x5f]]
        %v1319 = vstv %s1318
        %v1320 = vmul.f32 %v1281, %v1319
        %v1321 = vadd.f32 %v1317, %v1320
        %s1322 = scalar_lea.vmem %s339, 1 [#allocation12]
        %1323 = vst.msk [vmem:[%s1322] ss:$4 sm:$0xf] %vm1302, %v1321
        %v1324 = vmul.f32 %v1321, %v1321
        %v1325 = vadd.f32 %v1324, 1.837877
        %v1326 = vmul.f32 %v1325, 0.5
        %v1327 = vsub.f32 %v1307, %v1326
        %s1328 = sld [smem:[#allocation3 + $0x60]]
        %v1329 = vstv %s1328
        %v1330 = vmul.f32 %v1247, %v1329
        %s1331 = sld [smem:[#allocation7 + $0x20]]
        %v1332 = vstv %s1331
        %v1333 = vadd.f32 %v1330, %v1332
        %s1334 = sld [smem:[#allocation3 + $0x61]]
        %v1335 = vstv %s1334
        %v1336 = vmul.f32 %v1264, %v1335
        %v1337 = vadd.f32 %v1333, %v1336
        %s1338 = sld [smem:[#allocation3 + $0x62]]
        %v1339 = vstv %s1338
        %v1340 = vmul.f32 %v1281, %v1339
        %v1341 = vadd.f32 %v1337, %v1340
        %s1342 = scalar_lea.vmem %s339, 2 [#allocation12]
        %1343 = vst.msk [vmem:[%s1342] ss:$4 sm:$0xf] %vm1302, %v1341
        %v1344 = vmul.f32 %v1341, %v1341
        %v1345 = vadd.f32 %v1344, 1.837877
        %v1346 = vmul.f32 %v1345, 0.5
        %v1347 = vsub.f32 %v1327, %v1346
        %s1348 = sld [smem:[#allocation2]]
        %v1349 = vstv %s1348
        %v1350 = vadd.f32 %v1347, %v1349
        %1351 = vst.msk [vmem:[%s346] sm:$0xf] %vm1302, %v1350
        %s1352 = sand.u32 %s156, 1
        %s1353 = scalar_lea.sflag [#allocation5], %s1352
        %s1354 = sand.u32 %s156, 1
        %s1355 = smul.addr %s1354, 16
        %s1356 = scalar_lea.vmem [#allocation12], %s1355
        %s1357 = sand.u32 %s182, 1
        %s1358 = scalar_lea.sflag [#allocation14], %s1357
        %s1359 = sand.u32 %s182, 1
        %s1360 = smul.addr %s1359, 4
        %s1361 = scalar_lea.vmem [#allocation13], %s1360
        // Predicated region
        $region57: #{tpu_custom_call.1} parent=39 // pred_check
          %p1362 = pneg %p166
        $region58: #{tpu_custom_call.1} parent=39 // pred_check_branch
          %1364 = sbr.rel (%p1362) target = $region60
        $region59: #{tpu_custom_call.1} parent=39 // pred_region
          %s1365 = smul.u32 4, %s33
          %s1367 = ssub.s32 256, 256
          %1368 = vsyncadd %s1353, %s1367
          %s1369 = smul.addr %s1365, 64
          %s1370 = scalar_lea.hbm %s5, %s1369
          %s1372 = sshll.u32 %s1356, 4
          %s1373 = int_to_ptr.vmem [resolvable:$true] %s1372
          %1375 = dma.vmem_to_hbm [thread:$0]  %s1373, 256, %s1370, %s1353
        $region60: #{tpu_custom_call.1} parent=39 // pred_fallthru
          _
        // Predicated region
        $region61: #{tpu_custom_call.1} parent=39 // pred_check
          %p1376 = pneg %p192
        $region62: #{tpu_custom_call.1} parent=39 // pred_check_branch
          %1378 = sbr.rel (%p1376) target = $region64
        $region63: #{tpu_custom_call.1} parent=39 // pred_region
          %s1379 = smul.u32 4, %s33
          %s1381 = ssub.s32 64, 64
          %1382 = vsyncadd %s1358, %s1381
          %s1383 = smul.addr %s1379, 16
          %s1384 = scalar_lea.hbm %s6, %s1383
          %s1386 = sshll.u32 %s1361, 4
          %s1387 = int_to_ptr.vmem [resolvable:$true] %s1386
          %1389 = dma.vmem_to_hbm [thread:$0]  %s1387, 64, %s1384, %s1358
        $region64: #{tpu_custom_call.1} parent=39 // pred_fallthru
          _
      $region40: #{tpu_custom_call.1} parent=5 // pred_fallthru
        _
      %p1390 = scmp.le.s32.totalorder 2, %s28
      // Predicated region
      $region65: #{tpu_custom_call.1} parent=5 // pred_check
        %p1391 = pneg %p1390
      $region66: #{tpu_custom_call.1} parent=5 // pred_check_branch
        %1393 = sbr.rel (%p1391) target = $region68
      $region67: #{tpu_custom_call.1} parent=5 // pred_region
        %s1394 = ssub.s32 %s28, 2
        // Predicated region
        $region69: #{tpu_custom_call.1} parent=67 // pred_check
          %p1395 = pneg %p172
        $region70: #{tpu_custom_call.1} parent=67 // pred_check_branch
          %1397 = sbr.rel (%p1395) target = $region72
        $region71: #{tpu_custom_call.1} parent=67 // pred_region
          %s1398 = sand.u32 %s157, 1
          %s1399 = scalar_lea.sflag [#allocation5], %s1398
          %s1400 = sand.u32 %s157, 1
          %s1401 = smul.addr %s1400, 16
          %s1402 = scalar_lea.vmem [#allocation12], %s1401
          %1403 = dma.done %s1399, 256
        $region72: #{tpu_custom_call.1} parent=67 // pred_fallthru
          _
        // Predicated region
        $region73: #{tpu_custom_call.1} parent=67 // pred_check
          %p1404 = pneg %p198
        $region74: #{tpu_custom_call.1} parent=67 // pred_check_branch
          %1406 = sbr.rel (%p1404) target = $region76
        $region75: #{tpu_custom_call.1} parent=67 // pred_region
          %s1407 = sand.u32 %s183, 1
          %s1408 = scalar_lea.sflag [#allocation14], %s1407
          %s1409 = sand.u32 %s183, 1
          %s1410 = smul.addr %s1409, 4
          %s1411 = scalar_lea.vmem [#allocation13], %s1410
          %1412 = dma.done %s1408, 64
        $region76: #{tpu_custom_call.1} parent=67 // pred_fallthru
          _
      $region68: #{tpu_custom_call.1} parent=5 // pred_fallthru
        _
    $region6: #{tpu_custom_call.1} parent=1 // loop_footer
      %s32 = sadd.s32 1, %s28
    $region7: #{tpu_custom_call.1} parent=1 // loop_footer_branch
      %27 = sbr.rel target = $region3
    $region8: #{tpu_custom_call.1} parent=1 // loop_exit
      _
    %1413 = vsyncpa [#allocation4], 1
    %s1414 = scalar_lea.sflag [#allocation4], 1
    %1415 = vsyncpa %s1414, 1
    %1416 = vsyncpa [#allocation11], 1
    %s1417 = scalar_lea.sflag [#allocation11], 1
    %1418 = vsyncpa %s1417, 1
    %1419 = vsyncpa [#allocation5], 1
    %s1420 = scalar_lea.sflag [#allocation5], 1
    %1421 = vsyncpa %s1420, 1
    %1422 = vsyncpa [#allocation14], 1
    %s1423 = scalar_lea.sflag [#allocation14], 1
    %1424 = vsyncpa %s1423, 1
    %1425 = vsyncpa [#allocation6], 1
    %s1426 = scalar_lea.sflag [#allocation6], 1
    %1427 = vsyncpa %s1426, 1
    %1428 = vsyncpa [#allocation8], 1

</llo_original>
